<compile_context>
chip_gen: v5e
topology: v5e:2x2
jax: 0.10.0
libtpu: 0.0.40
codegen_flags: <defaults>
</compile_context>

<pallas_src>
import functools

import jax
import jax.numpy as jnp
from jax.experimental import pallas as pl
from jax.experimental.pallas import tpu as pltpu

# Hidden-layer sizes from the PyTorch module.
HIDDEN = (512, 256, 128, 64, 32)
OUT_DIM = 1

_LANE = 128
_DEFAULT_TB = 1024   # batch-tile rows (multiple of 128); amortizes ~600-cycle
                     # per-grid-step overhead while staying tiny vs VMEM on all
                     # generations (incl. v7x's 64 MiB physical VMEM).


def _round_up(x, m):
    return (x + m - 1) // m * m


def _mlp_kernel(x_ref, w1_ref, w2_ref, w3_ref, w45_ref, tail_ref, o_ref):
    """One batch tile of the whole forward pass.

    x_ref    : (TB, in_dim)  bf16
    w1_ref   : (in_dim, 512) bf16
    w2_ref   : (512, 256)    bf16
    w3_ref   : (256, 128)    bf16
    w45_ref  : (256, 128)    bf16  -- rows   0:128 = fc4 weights (cols 0:64 live)
                                      rows 128:192 = fc5 weights (cols 0:32 live)
                                      all padding exactly 0
    tail_ref : (8, 512)      f32   -- rows 0..5 = b1..b6 (zero lane-padded),
                                      row 6 = fc6 weight row (lanes 0:32 live)
    o_ref    : (TB, 1) f32
    """
    tail = tail_ref[...]
    b1 = tail[0:1, 0:512]
    b2 = tail[1:2, 0:256]
    b3 = tail[2:3, 0:128]
    b4 = tail[3:4, 0:128]        # zero beyond lane 64 (load-bearing for padding)
    b5 = tail[4:5, 0:128]        # zero beyond lane 32
    b6 = tail[5:6, 0:1]
    w6_row = tail[6:7, 0:128]    # zero beyond lane 32

    def linear_relu(h, w, b):
        # bf16 MXU inputs, f32 accumulation, fused bias + ReLU + bf16 cast epilogue
        # so intermediate activations are stored once, in bf16.
        z = jnp.dot(h, w, preferred_element_type=jnp.float32) + b
        return jnp.maximum(z, 0.0).astype(jnp.bfloat16)

    h = x_ref[...]                                   # already bf16 (wrapper cast)
    h = linear_relu(h, w1_ref[...], b1)              # fc1 + relu1
    h = linear_relu(h, w2_ref[...], b2)              # fc2 + relu2
    h = linear_relu(h, w3_ref[...], b3)              # fc3 + relu3
    h = linear_relu(h, w45_ref[0:128, :], b4)        # fc4 + relu4 (full 128 lanes)
    h = linear_relu(h, w45_ref[128:256, :], b5)      # fc5 + relu5 (full 128 lanes)

    # fc6 (single output column): VPU multiply + XLU lane-reduce instead of a
    # 1-column MXU matmul, then EUP sigmoid. Padded lanes are exactly 0 on both
    # h and w6_row, so they contribute nothing.
    z = jnp.sum(h.astype(jnp.float32) * w6_row, axis=-1, keepdims=True) + b6
    o_ref[...] = jax.nn.sigmoid(z)


def pack_params(params):
    """params: 6 x (W [in,out] f32, b [1,out] f32) -> packed kernel operands."""
    (w1, b1), (w2, b2), (w3, b3), (w4, b4), (w5, b5), (w6, b6) = params

    w1 = w1.astype(jnp.bfloat16)
    w2 = w2.astype(jnp.bfloat16)
    w3 = w3.astype(jnp.bfloat16)

    # fc4/fc5 weights zero-padded to full-128-lane slabs, stacked along sublanes:
    # padding must stay exactly 0 so padded activation columns are killed by the
    # zero weight rows / zero biases of the next layer.
    w45 = jnp.zeros((256, 128), jnp.bfloat16)
    w45 = w45.at[0:128, 0:64].set(w4.astype(jnp.bfloat16))
    w45 = w45.at[128:192, 0:32].set(w5.astype(jnp.bfloat16))

    # All biases + the fc6 weight row packed into one (8, 512) f32 slab
    # (zero lane-padding, again load-bearing for the padded fc4/fc5 columns).
    tail = jnp.zeros((8, 512), jnp.float32)
    for row, b in enumerate((b1, b2, b3, b4, b5, b6)):
        v = b.reshape(-1)
        tail = tail.at[row, 0:v.shape[0]].set(v)
    # fc6 weights rounded through bf16 like every other layer's weights.
    w6_row = w6.reshape(-1).astype(jnp.bfloat16).astype(jnp.float32)
    tail = tail.at[6, 0:w6_row.shape[0]].set(w6_row)

    return w1, w2, w3, w45, tail


@functools.partial(jax.jit, static_argnames=("block_batch",))
def salary_predictor_forward(x, packed, *, block_batch=_DEFAULT_TB):
    """x: [batch, input_dim] float32; packed: output of pack_params()."""
    w1, w2, w3, w45, tail = packed
    batch, in_dim = x.shape

    # ---- batch-tile selection (trace-time Python; shapes are static) --------
    tb = min(block_batch, _round_up(batch, _LANE))
    # v7x: when there are >= two 128-row tiles worth of work, make sure the grid
    # has >= 2 steps so the "parallel" axis can shard across both TensorCores.
    if batch >= 2 * _LANE and _round_up(batch, tb) // tb < 2:
        tb = _round_up(-(-batch // 2), _LANE)
    padded = _round_up(batch, tb)
    grid = (padded // tb,)

    # x in bf16: the kernel rounds activations to bf16 anyway; this halves the
    # only HBM stream that scales with batch and shrinks the x double-buffer.
    x = x.astype(jnp.bfloat16)
    if padded != batch:
        x = jnp.pad(x, ((0, padded - batch), (0, 0)))

    dims = (in_dim,) + HIDDEN + (OUT_DIM,)
    flops = 2 * padded * sum(a * b for a, b in zip(dims[:-1], dims[1:]))
    bytes_accessed = (x.size * 2 + w1.size * 2 + w2.size * 2 + w3.size * 2
                      + w45.size * 2 + tail.size * 4 + padded * OUT_DIM * 4)

    # Raise the scoped-VMEM cap only for oversize tiles; 64 MiB stays within
    # physical VMEM on v5e/v6e (128 MiB) and v7x (64 MiB).
    vmem_limit = 64 * 1024 * 1024 if tb > 1024 else None

    out = pl.pallas_call(
        _mlp_kernel,
        out_shape=jax.ShapeDtypeStruct((padded, OUT_DIM), jnp.float32),
        grid_spec=pltpu.PrefetchScalarGridSpec(
            num_scalar_prefetch=0,
            grid=grid,
            in_specs=[
                pl.BlockSpec((tb, in_dim), lambda i: (i, 0)),   # activations: tiled
                # Weights: constant index_map -> fetched once, resident in VMEM.
                pl.BlockSpec(w1.shape, lambda i: (0, 0)),
                pl.BlockSpec(w2.shape, lambda i: (0, 0)),
                pl.BlockSpec(w3.shape, lambda i: (0, 0)),
                pl.BlockSpec(w45.shape, lambda i: (0, 0)),
                pl.BlockSpec(tail.shape, lambda i: (0, 0)),
            ],
            # (tb, 1) output is lane-sparse but only 4 B/row; kept for lowering
            # safety (see header comment).
            out_specs=pl.BlockSpec((tb, OUT_DIM), lambda i: (i, 0)),
        ),
        compiler_params=pltpu.CompilerParams(
            dimension_semantics=("parallel",),
            vmem_limit_bytes=vmem_limit),
        cost_estimate=pl.CostEstimate(
            flops=flops, transcendentals=padded, bytes_accessed=bytes_accessed),
    )(x, w1, w2, w3, w45, tail)

    return out[:batch]


def init_params(key, input_dim):
    """Deterministic synthetic init matching nn.Linear shapes (stored transposed)."""
    dims = (input_dim,) + HIDDEN + (OUT_DIM,)
    params = []
    for i in range(len(dims) - 1):
        fan_in, fan_out = dims[i], dims[i + 1]
        key, kw, kb = jax.random.split(key, 3)
        bound = 1.0 / jnp.sqrt(jnp.float32(fan_in))
        w = jax.random.uniform(kw, (fan_in, fan_out), jnp.float32, -bound, bound)
        b = jax.random.uniform(kb, (1, fan_out), jnp.float32, -bound, bound)
        params.append((w, b))
    return params


def reference_forward(x, params):
    """Pure-JAX reference with the same bf16 weight/activation rounding as the kernel."""
    h = x.astype(jnp.bfloat16)
    for w, b in params[:-1]:
        z = jnp.dot(h, w.astype(jnp.bfloat16),
                    preferred_element_type=jnp.float32) + b
        h = jnp.maximum(z, 0.0).astype(jnp.bfloat16)
    w6, b6 = params[-1]
    w6_row = w6.reshape(1, -1).astype(jnp.bfloat16).astype(jnp.float32)
    z = jnp.sum(h.astype(jnp.float32) * w6_row, axis=-1, keepdims=True) + b6
    return jax.nn.sigmoid(z)


if __name__ == "__main__":
    key = jax.random.PRNGKey(0)
    batch = 8
    input_dim = 16  # stands in for len(encoded_dataframe.columns) - 1

    key, kx = jax.random.split(key)
    x = jax.random.normal(kx, (batch, input_dim), jnp.float32)
    params = init_params(key, input_dim)
    packed = pack_params(params)

    y = salary_predictor_forward(x, packed)
    y = jax.block_until_ready(y)

    y_ref = reference_forward(x, params)
    assert y.shape == (batch, OUT_DIM)
    assert jnp.allclose(y, y_ref, atol=1e-3, rtol=1e-3), "mismatch vs JAX reference"

    print("KERNEL_OK")
</pallas_src>

<mosaic_0001>
module attributes {stable_mosaic.version = 11 : i64} {
  func.func @_mlp_kernel(%arg0: i32, %arg1: memref<128x16xbf16, #tpu.memory_space<vmem>>, %arg2: memref<16x512xbf16, #tpu.memory_space<vmem>>, %arg3: memref<512x256xbf16, #tpu.memory_space<vmem>>, %arg4: memref<256x128xbf16, #tpu.memory_space<vmem>>, %arg5: memref<256x128xbf16, #tpu.memory_space<vmem>>, %arg6: memref<8x512xf32, #tpu.memory_space<vmem>>, %arg7: memref<128x1xf32, #tpu.memory_space<vmem>>) attributes {dimension_semantics = [#tpu.dimension_semantics<parallel>], iteration_bounds = array<i64: 1>, scalar_prefetch = 0 : i64, scratch_operands = 0 : i64, tpu.core_type = #tpu.core_type<tc>, window_params = [{transform_indices = @transform_0, window_bounds = array<i64: 128, 16>}, {pipeline_mode = #tpu.pipeline_mode<synchronous>, transform_indices = @transform_1, window_bounds = array<i64: 16, 512>}, {pipeline_mode = #tpu.pipeline_mode<synchronous>, transform_indices = @transform_2, window_bounds = array<i64: 512, 256>}, {pipeline_mode = #tpu.pipeline_mode<synchronous>, transform_indices = @transform_3, window_bounds = array<i64: 256, 128>}, {pipeline_mode = #tpu.pipeline_mode<synchronous>, transform_indices = @transform_4, window_bounds = array<i64: 256, 128>}, {pipeline_mode = #tpu.pipeline_mode<synchronous>, transform_indices = @transform_5, window_bounds = array<i64: 8, 512>}, {transform_indices = @transform_6, window_bounds = array<i64: 128, 1>}]} {
    %c0 = arith.constant 0 : index
    %c0_0 = arith.constant 0 : index
    %0 = vector.load %arg6[%c0, %c0_0] : memref<8x512xf32, #tpu.memory_space<vmem>>, vector<8x512xf32>
    %1 = vector.extract_strided_slice %0 {offsets = [0, 0], sizes = [1, 512], strides = [1, 1]} : vector<8x512xf32> to vector<1x512xf32>
    %2 = vector.extract_strided_slice %0 {offsets = [1, 0], sizes = [1, 256], strides = [1, 1]} : vector<8x512xf32> to vector<1x256xf32>
    %3 = vector.extract_strided_slice %0 {offsets = [2, 0], sizes = [1, 128], strides = [1, 1]} : vector<8x512xf32> to vector<1x128xf32>
    %4 = vector.extract_strided_slice %0 {offsets = [3, 0], sizes = [1, 128], strides = [1, 1]} : vector<8x512xf32> to vector<1x128xf32>
    %5 = vector.extract_strided_slice %0 {offsets = [4, 0], sizes = [1, 128], strides = [1, 1]} : vector<8x512xf32> to vector<1x128xf32>
    %6 = vector.extract_strided_slice %0 {offsets = [5, 0], sizes = [1, 1], strides = [1, 1]} : vector<8x512xf32> to vector<1x1xf32>
    %7 = vector.extract_strided_slice %0 {offsets = [6, 0], sizes = [1, 128], strides = [1, 1]} : vector<8x512xf32> to vector<1x128xf32>
    %c0_1 = arith.constant 0 : index
    %c0_2 = arith.constant 0 : index
    %8 = vector.load %arg1[%c0_1, %c0_2] : memref<128x16xbf16, #tpu.memory_space<vmem>>, vector<128x16xbf16>
    %c0_3 = arith.constant 0 : index
    %c0_4 = arith.constant 0 : index
    %9 = vector.load %arg2[%c0_3, %c0_4] : memref<16x512xbf16, #tpu.memory_space<vmem>>, vector<16x512xbf16>
    %cst = arith.constant dense<0.000000e+00> : vector<128x512xf32>
    %10 = tpu.matmul %8, %9, %cst {dimension_numbers = #tpu.dot_dimension_numbers<[1], [0], [0], [1], [0, 0, 1, 1], [], []>} : vector<128x16xbf16>, vector<16x512xbf16>, vector<128x512xf32> -> vector<128x512xf32>
    %11 = vector.broadcast %1 : vector<1x512xf32> to vector<128x512xf32>
    %12 = arith.addf %10, %11 : vector<128x512xf32>
    %cst_5 = arith.constant 0.000000e+00 : f32
    %13 = vector.broadcast %cst_5 : f32 to vector<128x512xf32>
    %14 = arith.maximumf %12, %13 : vector<128x512xf32>
    %15 = arith.truncf %14 : vector<128x512xf32> to vector<128x512xbf16>
    %c0_6 = arith.constant 0 : index
    %c0_7 = arith.constant 0 : index
    %16 = vector.load %arg3[%c0_6, %c0_7] : memref<512x256xbf16, #tpu.memory_space<vmem>>, vector<512x256xbf16>
    %cst_8 = arith.constant dense<0.000000e+00> : vector<128x256xf32>
    %17 = tpu.matmul %15, %16, %cst_8 {dimension_numbers = #tpu.dot_dimension_numbers<[1], [0], [0], [1], [0, 0, 1, 1], [], []>} : vector<128x512xbf16>, vector<512x256xbf16>, vector<128x256xf32> -> vector<128x256xf32>
    %18 = vector.broadcast %2 : vector<1x256xf32> to vector<128x256xf32>
    %19 = arith.addf %17, %18 : vector<128x256xf32>
    %cst_9 = arith.constant 0.000000e+00 : f32
    %20 = vector.broadcast %cst_9 : f32 to vector<128x256xf32>
    %21 = arith.maximumf %19, %20 : vector<128x256xf32>
    %22 = arith.truncf %21 : vector<128x256xf32> to vector<128x256xbf16>
    %c0_10 = arith.constant 0 : index
    %c0_11 = arith.constant 0 : index
    %23 = vector.load %arg4[%c0_10, %c0_11] : memref<256x128xbf16, #tpu.memory_space<vmem>>, vector<256x128xbf16>
    %cst_12 = arith.constant dense<0.000000e+00> : vector<128x128xf32>
    %24 = tpu.matmul %22, %23, %cst_12 {dimension_numbers = #tpu.dot_dimension_numbers<[1], [0], [0], [1], [0, 0, 1, 1], [], []>} : vector<128x256xbf16>, vector<256x128xbf16>, vector<128x128xf32> -> vector<128x128xf32>
    %25 = vector.broadcast %3 : vector<1x128xf32> to vector<128x128xf32>
    %26 = arith.addf %24, %25 : vector<128x128xf32>
    %cst_13 = arith.constant 0.000000e+00 : f32
    %27 = vector.broadcast %cst_13 : f32 to vector<128x128xf32>
    %28 = arith.maximumf %26, %27 : vector<128x128xf32>
    %29 = arith.truncf %28 : vector<128x128xf32> to vector<128x128xbf16>
    %c0_14 = arith.constant 0 : index
    %c0_15 = arith.constant 0 : index
    %30 = vector.load %arg5[%c0_14, %c0_15] : memref<256x128xbf16, #tpu.memory_space<vmem>>, vector<128x128xbf16>
    %cst_16 = arith.constant dense<0.000000e+00> : vector<128x128xf32>
    %31 = tpu.matmul %29, %30, %cst_16 {dimension_numbers = #tpu.dot_dimension_numbers<[1], [0], [0], [1], [0, 0, 1, 1], [], []>} : vector<128x128xbf16>, vector<128x128xbf16>, vector<128x128xf32> -> vector<128x128xf32>
    %32 = vector.broadcast %4 : vector<1x128xf32> to vector<128x128xf32>
    %33 = arith.addf %31, %32 : vector<128x128xf32>
    %cst_17 = arith.constant 0.000000e+00 : f32
    %34 = vector.broadcast %cst_17 : f32 to vector<128x128xf32>
    %35 = arith.maximumf %33, %34 : vector<128x128xf32>
    %36 = arith.truncf %35 : vector<128x128xf32> to vector<128x128xbf16>
    %c128 = arith.constant 128 : index
    %c0_18 = arith.constant 0 : index
    %37 = vector.load %arg5[%c128, %c0_18] : memref<256x128xbf16, #tpu.memory_space<vmem>>, vector<128x128xbf16>
    %cst_19 = arith.constant dense<0.000000e+00> : vector<128x128xf32>
    %38 = tpu.matmul %36, %37, %cst_19 {dimension_numbers = #tpu.dot_dimension_numbers<[1], [0], [0], [1], [0, 0, 1, 1], [], []>} : vector<128x128xbf16>, vector<128x128xbf16>, vector<128x128xf32> -> vector<128x128xf32>
    %39 = vector.broadcast %5 : vector<1x128xf32> to vector<128x128xf32>
    %40 = arith.addf %38, %39 : vector<128x128xf32>
    %cst_20 = arith.constant 0.000000e+00 : f32
    %41 = vector.broadcast %cst_20 : f32 to vector<128x128xf32>
    %42 = arith.maximumf %40, %41 : vector<128x128xf32>
    %43 = arith.truncf %42 : vector<128x128xf32> to vector<128x128xbf16>
    %44 = arith.extf %43 : vector<128x128xbf16> to vector<128x128xf32>
    %45 = vector.broadcast %7 : vector<1x128xf32> to vector<128x128xf32>
    %46 = arith.mulf %44, %45 : vector<128x128xf32>
    %cst_21 = arith.constant dense<0.000000e+00> : vector<128xf32>
    %47 = vector.multi_reduction <add>, %46, %cst_21 [1] : vector<128x128xf32> to vector<128xf32>
    %48 = vector.shape_cast %47 : vector<128xf32> to vector<128x1xf32>
    %49 = vector.broadcast %6 : vector<1x1xf32> to vector<128x1xf32>
    %50 = arith.addf %48, %49 : vector<128x1xf32>
    %51 = arith.negf %50 : vector<128x1xf32>
    %52 = math.exp %51 : vector<128x1xf32>
    %cst_22 = arith.constant 1.000000e+00 : f32
    %53 = vector.broadcast %cst_22 : f32 to vector<128x1xf32>
    %54 = arith.addf %53, %52 : vector<128x1xf32>
    %55 = arith.divf %53, %54 : vector<128x1xf32>
    %c0_23 = arith.constant 0 : index
    %c0_24 = arith.constant 0 : index
    %56 = vector.load %arg7[%c0_23, %c0_24] : memref<128x1xf32, #tpu.memory_space<vmem>>, vector<128x1xf32>
    tpu.vector_store %arg7[%c0_23, %c0_24], %55 {strides = array<i32>} : memref<128x1xf32, #tpu.memory_space<vmem>>, vector<128x1xf32>,
    return
  }
  func.func @transform_0(%arg0: i32) -> (i32, i32) {
    %c0_i32 = arith.constant 0 : i32
    %c0_i32_0 = arith.constant 0 : i32
    return %arg0, %c0_i32 : i32, i32
  }
  func.func @transform_1(%arg0: i32) -> (i32, i32) {
    %c0_i32 = arith.constant 0 : i32
    %c0_i32_0 = arith.constant 0 : i32
    %c0_i32_1 = arith.constant 0 : i32
    return %c0_i32, %c0_i32_0 : i32, i32
  }
  func.func @transform_2(%arg0: i32) -> (i32, i32) {
    %c0_i32 = arith.constant 0 : i32
    %c0_i32_0 = arith.constant 0 : i32
    %c0_i32_1 = arith.constant 0 : i32
    return %c0_i32, %c0_i32_0 : i32, i32
  }
  func.func @transform_3(%arg0: i32) -> (i32, i32) {
    %c0_i32 = arith.constant 0 : i32
    %c0_i32_0 = arith.constant 0 : i32
    %c0_i32_1 = arith.constant 0 : i32
    return %c0_i32, %c0_i32_0 : i32, i32
  }
  func.func @transform_4(%arg0: i32) -> (i32, i32) {
    %c0_i32 = arith.constant 0 : i32
    %c0_i32_0 = arith.constant 0 : i32
    %c0_i32_1 = arith.constant 0 : i32
    return %c0_i32, %c0_i32_0 : i32, i32
  }
  func.func @transform_5(%arg0: i32) -> (i32, i32) {
    %c0_i32 = arith.constant 0 : i32
    %c0_i32_0 = arith.constant 0 : i32
    %c0_i32_1 = arith.constant 0 : i32
    return %c0_i32, %c0_i32_0 : i32, i32
  }
  func.func @transform_6(%arg0: i32) -> (i32, i32) {
    %c0_i32 = arith.constant 0 : i32
    %c0_i32_0 = arith.constant 0 : i32
    return %arg0, %c0_i32 : i32, i32
  }
}

</mosaic_0001>

<llo_original>
// kernel: salary_predictor_forward.1
$region0: #{salary_predictor_forward.1}
  #allocation0 [shape = 'u32[]', space=smem, size = 0x4, offset = 0x4, fixed_abs, tag = 'smem constant byte address 0x4 - core index']
  #allocation1 [shape = 'u32[72,128]{1,0:T(1,128)}', space=vmem, size = 0x9000, scoped, tag = 'internal scratch']
  %s0 = inlined_call_operand.vmem [shape: bf16[128,16], index: 0, kind: input, shape index: {}]
  %s1 = inlined_call_operand.vmem [shape: bf16[16,512], index: 1, kind: input, shape index: {}]
  %s2 = inlined_call_operand.hbm [shape: bf16[512,256], index: 2, kind: input, shape index: {}]
  %s3 = inlined_call_operand.hbm [shape: bf16[256,128], index: 3, kind: input, shape index: {}]
  %s4 = inlined_call_operand.hbm [shape: bf16[256,128], index: 4, kind: input, shape index: {}]
  %s5 = inlined_call_operand.vmem [shape: f32[8,512], index: 5, kind: input, shape index: {}]
  %s6 = inlined_call_operand.vmem [shape: f32[128,1], index: 6, kind: output, shape index: {}]
  %s7 = sld [smem:[#allocation0]]
  $region46: #{salary_predictor_forward.1} parent=0
    _
  %s9 = ssub.s32 1, %s7
  %s10 = scalar_select 0, %s9, %s7
  $region1: #{salary_predictor_forward.1} parent=0
    #allocation2 [shape = 'u8[262144]{0}', space=vmem, size = 0x40000, scoped, tag = 'input window, operand 2, single buffered']
    #allocation3 [shape = 's32[1]{0}', space=sflag, size = 0x4, scoped, tag = 'scoped memory for salary_predictor_forward.1']
    #allocation4 [shape = 'u8[65536]{0}', space=vmem, size = 0x10000, scoped, tag = 'input window, operand 3, single buffered']
    #allocation5 [shape = 's32[1]{0}', space=sflag, size = 0x4, scoped, tag = 'scoped memory for salary_predictor_forward.1']
    #allocation6 [shape = 'u8[65536]{0}', space=vmem, size = 0x10000, scoped, tag = 'input window, operand 4, single buffered']
    %11 = vsyncpa [#allocation3], 0
    %12 = vsyncpa [#allocation5], 0
    // Predicated region
    $region2: #{salary_predictor_forward.1} parent=1 // pred_check
      _
    $region3: #{salary_predictor_forward.1} parent=1 // pred_check_branch
      %14 = sbr.rel (0) target = $region5
    $region4: #{salary_predictor_forward.1} parent=1 // pred_region
      _
    $region5: #{salary_predictor_forward.1} parent=1 // pred_fallthru
      _
    // Predicated region
    $region6: #{salary_predictor_forward.1} parent=1 // pred_check
      _
    $region7: #{salary_predictor_forward.1} parent=1 // pred_check_branch
      %16 = sbr.rel (0) target = $region9
    $region8: #{salary_predictor_forward.1} parent=1 // pred_region
      _
    $region9: #{salary_predictor_forward.1} parent=1 // pred_fallthru
      _
    // Predicated region
    $region10: #{salary_predictor_forward.1} parent=1 // pred_check
      _
    $region11: #{salary_predictor_forward.1} parent=1 // pred_check_branch
      %18 = sbr.rel (0) target = $region13
    $region12: #{salary_predictor_forward.1} parent=1 // pred_region
      %20 = vsyncadd [#allocation3], 0
      %s21 = sshll.u32 %s2, 4
      %s22 = int_to_ptr.hbm [resolvable:$true] %s21
      %s23 = sshll.u32 [#allocation2], 4
      %s24 = int_to_ptr.vmem [resolvable:$true] %s23
      %29 = dma.hbm_to_vmem [thread:$0]  %s22, 8192, %s24, [#allocation3], 128, 128, 8
    $region13: #{salary_predictor_forward.1} parent=1 // pred_fallthru
      _
    // Predicated region
    $region14: #{salary_predictor_forward.1} parent=1 // pred_check
      _
    $region15: #{salary_predictor_forward.1} parent=1 // pred_check_branch
      %31 = sbr.rel (0) target = $region17
    $region16: #{salary_predictor_forward.1} parent=1 // pred_region
      %33 = vsyncadd [#allocation5], 0
      %s34 = sshll.u32 %s3, 4
      %s35 = int_to_ptr.hbm [resolvable:$true] %s34
      %s36 = sshll.u32 [#allocation4], 4
      %s37 = int_to_ptr.vmem [resolvable:$true] %s36
      %42 = dma.hbm_to_vmem [thread:$0]  %s35, 2048, %s37, [#allocation5], 64, 64, 4
    $region17: #{salary_predictor_forward.1} parent=1 // pred_fallthru
      _
    // Predicated region
    $region18: #{salary_predictor_forward.1} parent=1 // pred_check
      _
    $region19: #{salary_predictor_forward.1} parent=1 // pred_check_branch
      %44 = sbr.rel (0) target = $region21
    $region20: #{salary_predictor_forward.1} parent=1 // pred_region
      %46 = vsyncadd [#allocation5], 0
      %s47 = sshll.u32 %s4, 4
      %s48 = int_to_ptr.hbm [resolvable:$true] %s47
      %s49 = sshll.u32 [#allocation6], 4
      %s50 = int_to_ptr.vmem [resolvable:$true] %s49
      %55 = dma.hbm_to_vmem [thread:$0]  %s48, 2048, %s50, [#allocation5], 64, 64, 4
    $region21: #{salary_predictor_forward.1} parent=1 // pred_fallthru
      _
    // Predicated region
    $region22: #{salary_predictor_forward.1} parent=1 // pred_check
      _
    $region23: #{salary_predictor_forward.1} parent=1 // pred_check_branch
      %57 = sbr.rel (0) target = $region25
    $region24: #{salary_predictor_forward.1} parent=1 // pred_region
      _
    $region25: #{salary_predictor_forward.1} parent=1 // pred_fallthru
      _
    // Predicated region
    $region26: #{salary_predictor_forward.1} parent=1 // pred_check
      _
    $region27: #{salary_predictor_forward.1} parent=1 // pred_check_branch
      %59 = sbr.rel (0) target = $region29
    $region28: #{salary_predictor_forward.1} parent=1 // pred_region
      %61 = dma.done [#allocation3], 8192
    $region29: #{salary_predictor_forward.1} parent=1 // pred_fallthru
      _
    // Predicated region
    $region30: #{salary_predictor_forward.1} parent=1 // pred_check
      _
    $region31: #{salary_predictor_forward.1} parent=1 // pred_check_branch
      %63 = sbr.rel (0) target = $region33
    $region32: #{salary_predictor_forward.1} parent=1 // pred_region
      %65 = dma.done [#allocation5], 2048
    $region33: #{salary_predictor_forward.1} parent=1 // pred_fallthru
      _
    // Predicated region
    $region34: #{salary_predictor_forward.1} parent=1 // pred_check
      _
    $region35: #{salary_predictor_forward.1} parent=1 // pred_check_branch
      %67 = sbr.rel (0) target = $region37
    $region36: #{salary_predictor_forward.1} parent=1 // pred_region
      %69 = dma.done [#allocation5], 2048
    $region37: #{salary_predictor_forward.1} parent=1 // pred_fallthru
      _
    %v71 = vld [vmem:[%s5] sm:$0xff]
    %v72 = vld [vmem:[%s5 + $0x8] sm:$0xff]
    %v73 = vld [vmem:[%s5 + $0x10] sm:$0xff]
    %v74 = vld [vmem:[%s5 + $0x18] sm:$0xff]
    %v75 = vld [vmem:[%s0] sm:$0xf]
    %v76 = vld [vmem:[%s0 + $0x4] sm:$0xf]
    %v77 = vld [vmem:[%s0 + $0x8] sm:$0xf]
    %v78 = vld [vmem:[%s0 + $0xc] sm:$0xf]
    %v79 = vld [vmem:[%s0 + $0x10] sm:$0xf]
    %v80 = vld [vmem:[%s0 + $0x14] sm:$0xf]
    %v81 = vld [vmem:[%s0 + $0x18] sm:$0xf]
    %v82 = vld [vmem:[%s0 + $0x1c] sm:$0xf]
    %v83 = vld [vmem:[%s0 + $0x20] sm:$0xf]
    %v84 = vld [vmem:[%s0 + $0x24] sm:$0xf]
    %v85 = vld [vmem:[%s0 + $0x28] sm:$0xf]
    %v86 = vld [vmem:[%s0 + $0x2c] sm:$0xf]
    %v87 = vld [vmem:[%s0 + $0x30] sm:$0xf]
    %v88 = vld [vmem:[%s0 + $0x34] sm:$0xf]
    %v89 = vld [vmem:[%s0 + $0x38] sm:$0xf]
    %v90 = vld [vmem:[%s0 + $0x3c] sm:$0xf]
    %v91 = vld [vmem:[%s1] sm:$0xff]
    %v92 = vld [vmem:[%s1 + $0x8] sm:$0xff]
    %v93 = vld [vmem:[%s1 + $0x10] sm:$0xff]
    %v94 = vld [vmem:[%s1 + $0x18] sm:$0xff]
    %v95 = vperm.slane %v71, 0
    %v96 = vperm.slane %v72, 0
    %v97 = vperm.slane %v73, 0
    %v98 = vperm.slane %v74, 0
    %v115 = vunpack.c.l.b16 %v75
    %v116 = vunpack.c.l.b16 %v76
    %v117 = vunpack.c.l.b16 %v77
    %v118 = vunpack.c.l.b16 %v78
    %v119 = vunpack.c.l.b16 %v79
    %v120 = vunpack.c.l.b16 %v80
    %v121 = vunpack.c.l.b16 %v81
    %v122 = vunpack.c.l.b16 %v82
    %v123 = vunpack.c.l.b16 %v83
    %v124 = vunpack.c.l.b16 %v84
    %v125 = vunpack.c.l.b16 %v85
    %v126 = vunpack.c.l.b16 %v86
    %v127 = vunpack.c.l.b16 %v87
    %v128 = vunpack.c.l.b16 %v88
    %v129 = vunpack.c.l.b16 %v89
    %v130 = vunpack.c.l.b16 %v90
    %v131 = vpack.c.b16 %v116, %v115
    %v132 = vpack.c.b16 %v118, %v117
    %v133 = vpack.c.b16 %v120, %v119
    %v134 = vpack.c.b16 %v122, %v121
    %v135 = vpack.c.b16 %v124, %v123
    %v136 = vpack.c.b16 %v126, %v125
    %v137 = vpack.c.b16 %v128, %v127
    %v138 = vpack.c.b16 %v130, %v129
    %v143 = vunpack.c.l.b16 %v91
    %v144 = vunpack.c.h.b16 %v91
    %v145 = vunpack.c.l.b16 %v92
    %v146 = vunpack.c.h.b16 %v92
    %v147 = vunpack.c.l.b16 %v93
    %v148 = vunpack.c.h.b16 %v93
    %v149 = vunpack.c.l.b16 %v94
    %v150 = vunpack.c.h.b16 %v94
    %v151 = vpack.c.b16 %v147, %v143
    %v152 = vpack.c.b16 %v148, %v144
    %v153 = vpack.c.b16 %v149, %v145
    %v154 = vpack.c.b16 %v150, %v146
    %vm159 = vcmask 130048
    %v161 = vsel %vm159, %v131, 0
    %v164 = vsel %vm159, %v132, 0
    %v167 = vsel %vm159, %v133, 0
    %v170 = vsel %vm159, %v134, 0
    %v173 = vsel %vm159, %v135, 0
    %v176 = vsel %vm159, %v136, 0
    %v179 = vsel %vm159, %v137, 0
    %v182 = vsel %vm159, %v138, 0
    %184 = vmatpush.bf16.msra.mxu0 0
    %185 = vmatpush.bf16.msra.mxu0 0
    %186 = vmatpush.bf16.msra.mxu0 0
    %187 = vmatpush.bf16.msra.mxu0 0
    %188 = vmatpush.bf16.msra.mxu0 0
    %189 = vmatpush.bf16.msra.mxu0 0
    %190 = vmatpush.bf16.msra.mxu0 0
    %191 = vmatpush.bf16.msra.mxu0 %v151
    %192 = vmatmul.bf16.gmra.mxu0 %v161
    %v193 = vpop.f32.mrf.mxu0
    %v194 = vadd.f32 %v95, %v193
    %v195 = vpop.f32.mrf.mxu0
    %v196 = vadd.f32 %v95, %v195
    %197 = vmatmul.bf16.gmra.mxu0 %v164
    %v198 = vpop.f32.mrf.mxu0
    %v199 = vadd.f32 %v95, %v198
    %v200 = vpop.f32.mrf.mxu0
    %v201 = vadd.f32 %v95, %v200
    %202 = vmatmul.bf16.gmra.mxu0 %v167
    %v203 = vpop.f32.mrf.mxu0
    %v204 = vadd.f32 %v95, %v203
    %v205 = vpop.f32.mrf.mxu0
    %v206 = vadd.f32 %v95, %v205
    %207 = vmatmul.bf16.gmra.mxu0 %v170
    %v208 = vpop.f32.mrf.mxu0
    %v209 = vadd.f32 %v95, %v208
    %v210 = vpop.f32.mrf.mxu0
    %v211 = vadd.f32 %v95, %v210
    %212 = vmatmul.bf16.gmra.mxu0 %v173
    %v213 = vpop.f32.mrf.mxu0
    %v214 = vadd.f32 %v95, %v213
    %v215 = vpop.f32.mrf.mxu0
    %v216 = vadd.f32 %v95, %v215
    %217 = vmatmul.bf16.gmra.mxu0 %v176
    %v218 = vpop.f32.mrf.mxu0
    %v219 = vadd.f32 %v95, %v218
    %v220 = vpop.f32.mrf.mxu0
    %v221 = vadd.f32 %v95, %v220
    %222 = vmatmul.bf16.gmra.mxu0 %v179
    %v223 = vpop.f32.mrf.mxu0
    %v224 = vadd.f32 %v95, %v223
    %v225 = vpop.f32.mrf.mxu0
    %v226 = vadd.f32 %v95, %v225
    %227 = vmatmul.bf16.gmra.mxu0 %v182
    %v228 = vpop.f32.mrf.mxu0
    %v229 = vadd.f32 %v95, %v228
    %v230 = vpop.f32.mrf.mxu0
    %v231 = vadd.f32 %v95, %v230
    %232 = vdwg.mxu0
    %233 = vmatpush.bf16.msra.mxu0 0
    %234 = vmatpush.bf16.msra.mxu0 0
    %235 = vmatpush.bf16.msra.mxu0 0
    %236 = vmatpush.bf16.msra.mxu0 0
    %237 = vmatpush.bf16.msra.mxu0 0
    %238 = vmatpush.bf16.msra.mxu0 0
    %239 = vmatpush.bf16.msra.mxu0 0
    %240 = vmatpush.bf16.msra.mxu0 %v152
    %241 = vmatmul.bf16.gmra.mxu0 %v161
    %v242 = vpop.f32.mrf.mxu0
    %v243 = vadd.f32 %v96, %v242
    %v244 = vpop.f32.mrf.mxu0
    %v245 = vadd.f32 %v96, %v244
    %246 = vmatmul.bf16.gmra.mxu0 %v164
    %v247 = vpop.f32.mrf.mxu0
    %v248 = vadd.f32 %v96, %v247
    %v249 = vpop.f32.mrf.mxu0
    %v250 = vadd.f32 %v96, %v249
    %251 = vmatmul.bf16.gmra.mxu0 %v167
    %v252 = vpop.f32.mrf.mxu0
    %v253 = vadd.f32 %v96, %v252
    %v254 = vpop.f32.mrf.mxu0
    %v255 = vadd.f32 %v96, %v254
    %256 = vmatmul.bf16.gmra.mxu0 %v170
    %v257 = vpop.f32.mrf.mxu0
    %v258 = vadd.f32 %v96, %v257
    %v259 = vpop.f32.mrf.mxu0
    %v260 = vadd.f32 %v96, %v259
    %261 = vmatmul.bf16.gmra.mxu0 %v173
    %v262 = vpop.f32.mrf.mxu0
    %v263 = vadd.f32 %v96, %v262
    %v264 = vpop.f32.mrf.mxu0
    %v265 = vadd.f32 %v96, %v264
    %266 = vmatmul.bf16.gmra.mxu0 %v176
    %v267 = vpop.f32.mrf.mxu0
    %v268 = vadd.f32 %v96, %v267
    %v269 = vpop.f32.mrf.mxu0
    %v270 = vadd.f32 %v96, %v269
    %271 = vmatmul.bf16.gmra.mxu0 %v179
    %v272 = vpop.f32.mrf.mxu0
    %v273 = vadd.f32 %v96, %v272
    %v274 = vpop.f32.mrf.mxu0
    %v275 = vadd.f32 %v96, %v274
    %276 = vmatmul.bf16.gmra.mxu0 %v182
    %v277 = vpop.f32.mrf.mxu0
    %v278 = vadd.f32 %v96, %v277
    %v279 = vpop.f32.mrf.mxu0
    %v280 = vadd.f32 %v96, %v279
    %281 = vdwg.mxu0
    %282 = vmatpush.bf16.msra.mxu0 0
    %283 = vmatpush.bf16.msra.mxu0 0
    %284 = vmatpush.bf16.msra.mxu0 0
    %285 = vmatpush.bf16.msra.mxu0 0
    %286 = vmatpush.bf16.msra.mxu0 0
    %287 = vmatpush.bf16.msra.mxu0 0
    %288 = vmatpush.bf16.msra.mxu0 0
    %289 = vmatpush.bf16.msra.mxu0 %v153
    %290 = vmatmul.bf16.gmra.mxu0 %v161
    %v291 = vpop.f32.mrf.mxu0
    %v292 = vadd.f32 %v97, %v291
    %v293 = vpop.f32.mrf.mxu0
    %v294 = vadd.f32 %v97, %v293
    %295 = vmatmul.bf16.gmra.mxu0 %v164
    %v296 = vpop.f32.mrf.mxu0
    %v297 = vadd.f32 %v97, %v296
    %v298 = vpop.f32.mrf.mxu0
    %v299 = vadd.f32 %v97, %v298
    %300 = vmatmul.bf16.gmra.mxu0 %v167
    %v301 = vpop.f32.mrf.mxu0
    %v302 = vadd.f32 %v97, %v301
    %v303 = vpop.f32.mrf.mxu0
    %v304 = vadd.f32 %v97, %v303
    %305 = vmatmul.bf16.gmra.mxu0 %v170
    %v306 = vpop.f32.mrf.mxu0
    %v307 = vadd.f32 %v97, %v306
    %v308 = vpop.f32.mrf.mxu0
    %v309 = vadd.f32 %v97, %v308
    %310 = vmatmul.bf16.gmra.mxu0 %v173
    %v311 = vpop.f32.mrf.mxu0
    %v312 = vadd.f32 %v97, %v311
    %v313 = vpop.f32.mrf.mxu0
    %v314 = vadd.f32 %v97, %v313
    %315 = vmatmul.bf16.gmra.mxu0 %v176
    %v316 = vpop.f32.mrf.mxu0
    %v317 = vadd.f32 %v97, %v316
    %v318 = vpop.f32.mrf.mxu0
    %v319 = vadd.f32 %v97, %v318
    %320 = vmatmul.bf16.gmra.mxu0 %v179
    %v321 = vpop.f32.mrf.mxu0
    %v322 = vadd.f32 %v97, %v321
    %v323 = vpop.f32.mrf.mxu0
    %v324 = vadd.f32 %v97, %v323
    %325 = vmatmul.bf16.gmra.mxu0 %v182
    %v326 = vpop.f32.mrf.mxu0
    %v327 = vadd.f32 %v97, %v326
    %v328 = vpop.f32.mrf.mxu0
    %v329 = vadd.f32 %v97, %v328
    %330 = vdwg.mxu0
    %331 = vmatpush.bf16.msra.mxu0 0
    %332 = vmatpush.bf16.msra.mxu0 0
    %333 = vmatpush.bf16.msra.mxu0 0
    %334 = vmatpush.bf16.msra.mxu0 0
    %335 = vmatpush.bf16.msra.mxu0 0
    %336 = vmatpush.bf16.msra.mxu0 0
    %337 = vmatpush.bf16.msra.mxu0 0
    %338 = vmatpush.bf16.msra.mxu0 %v154
    %339 = vmatmul.bf16.gmra.mxu0 %v161
    %v340 = vpop.f32.mrf.mxu0
    %v341 = vadd.f32 %v98, %v340
    %v342 = vpop.f32.mrf.mxu0
    %v343 = vadd.f32 %v98, %v342
    %344 = vmatmul.bf16.gmra.mxu0 %v164
    %v345 = vpop.f32.mrf.mxu0
    %v346 = vadd.f32 %v98, %v345
    %v347 = vpop.f32.mrf.mxu0
    %v348 = vadd.f32 %v98, %v347
    %349 = vmatmul.bf16.gmra.mxu0 %v167
    %v350 = vpop.f32.mrf.mxu0
    %v351 = vadd.f32 %v98, %v350
    %v352 = vpop.f32.mrf.mxu0
    %v353 = vadd.f32 %v98, %v352
    %354 = vmatmul.bf16.gmra.mxu0 %v170
    %v355 = vpop.f32.mrf.mxu0
    %v356 = vadd.f32 %v98, %v355
    %v357 = vpop.f32.mrf.mxu0
    %v358 = vadd.f32 %v98, %v357
    %359 = vmatmul.bf16.gmra.mxu0 %v173
    %v360 = vpop.f32.mrf.mxu0
    %v361 = vadd.f32 %v98, %v360
    %v362 = vpop.f32.mrf.mxu0
    %v363 = vadd.f32 %v98, %v362
    %364 = vmatmul.bf16.gmra.mxu0 %v176
    %v365 = vpop.f32.mrf.mxu0
    %v366 = vadd.f32 %v98, %v365
    %v367 = vpop.f32.mrf.mxu0
    %v368 = vadd.f32 %v98, %v367
    %369 = vmatmul.bf16.gmra.mxu0 %v179
    %v370 = vpop.f32.mrf.mxu0
    %v371 = vadd.f32 %v98, %v370
    %v372 = vpop.f32.mrf.mxu0
    %v373 = vadd.f32 %v98, %v372
    %374 = vmatmul.bf16.gmra.mxu0 %v182
    %v375 = vpop.f32.mrf.mxu0
    %v376 = vadd.f32 %v98, %v375
    %v377 = vpop.f32.mrf.mxu0
    %v378 = vadd.f32 %v98, %v377
    %379 = vdwg.mxu0
    %v380 = vmax.f32 %v194, 0.0
    %v381 = vmax.f32 %v243, 0.0
    %v382 = vmax.f32 %v292, 0.0
    %v383 = vmax.f32 %v341, 0.0
    %v384 = vmax.f32 %v196, 0.0
    %v385 = vmax.f32 %v245, 0.0
    %v386 = vmax.f32 %v294, 0.0
    %v387 = vmax.f32 %v343, 0.0
    %v388 = vmax.f32 %v199, 0.0
    %v389 = vmax.f32 %v248, 0.0
    %v390 = vmax.f32 %v297, 0.0
    %v391 = vmax.f32 %v346, 0.0
    %v392 = vmax.f32 %v201, 0.0
    %v393 = vmax.f32 %v250, 0.0
    %v394 = vmax.f32 %v299, 0.0
    %v395 = vmax.f32 %v348, 0.0
    %v396 = vmax.f32 %v204, 0.0
    %v397 = vmax.f32 %v253, 0.0
    %v398 = vmax.f32 %v302, 0.0
    %v399 = vmax.f32 %v351, 0.0
    %v400 = vmax.f32 %v206, 0.0
    %v401 = vmax.f32 %v255, 0.0
    %v402 = vmax.f32 %v304, 0.0
    %v403 = vmax.f32 %v353, 0.0
    %v404 = vmax.f32 %v209, 0.0
    %v405 = vmax.f32 %v258, 0.0
    %v406 = vmax.f32 %v307, 0.0
    %v407 = vmax.f32 %v356, 0.0
    %v408 = vmax.f32 %v211, 0.0
    %v409 = vmax.f32 %v260, 0.0
    %v410 = vmax.f32 %v309, 0.0
    %v411 = vmax.f32 %v358, 0.0
    %v412 = vmax.f32 %v214, 0.0
    %v413 = vmax.f32 %v263, 0.0
    %v414 = vmax.f32 %v312, 0.0
    %v415 = vmax.f32 %v361, 0.0
    %v416 = vmax.f32 %v216, 0.0
    %v417 = vmax.f32 %v265, 0.0
    %v418 = vmax.f32 %v314, 0.0
    %v419 = vmax.f32 %v363, 0.0
    %v420 = vmax.f32 %v219, 0.0
    %v421 = vmax.f32 %v268, 0.0
    %v422 = vmax.f32 %v317, 0.0
    %v423 = vmax.f32 %v366, 0.0
    %v424 = vmax.f32 %v221, 0.0
    %v425 = vmax.f32 %v270, 0.0
    %v426 = vmax.f32 %v319, 0.0
    %v427 = vmax.f32 %v368, 0.0
    %v428 = vmax.f32 %v224, 0.0
    %v429 = vmax.f32 %v273, 0.0
    %v430 = vmax.f32 %v322, 0.0
    %v431 = vmax.f32 %v371, 0.0
    %v432 = vmax.f32 %v226, 0.0
    %v433 = vmax.f32 %v275, 0.0
    %v434 = vmax.f32 %v324, 0.0
    %v435 = vmax.f32 %v373, 0.0
    %v436 = vmax.f32 %v229, 0.0
    %v437 = vmax.f32 %v278, 0.0
    %v438 = vmax.f32 %v327, 0.0
    %v439 = vmax.f32 %v376, 0.0
    %v440 = vmax.f32 %v231, 0.0
    %v441 = vmax.f32 %v280, 0.0
    %v442 = vmax.f32 %v329, 0.0
    %v443 = vmax.f32 %v378, 0.0
    %v444 = vpack.c.bf16 %v384, %v380
    %v445 = vpack.c.bf16 %v385, %v381
    %v446 = vpack.c.bf16 %v386, %v382
    %v447 = vpack.c.bf16 %v387, %v383
    %v448 = vpack.c.bf16 %v392, %v388
    %v449 = vpack.c.bf16 %v393, %v389
    %v450 = vpack.c.bf16 %v394, %v390
    %v451 = vpack.c.bf16 %v395, %v391
    %v452 = vpack.c.bf16 %v400, %v396
    %v453 = vpack.c.bf16 %v401, %v397
    %v454 = vpack.c.bf16 %v402, %v398
    %v455 = vpack.c.bf16 %v403, %v399
    %v456 = vpack.c.bf16 %v408, %v404
    %v457 = vpack.c.bf16 %v409, %v405
    %v458 = vpack.c.bf16 %v410, %v406
    %v459 = vpack.c.bf16 %v411, %v407
    %v460 = vpack.c.bf16 %v416, %v412
    %v461 = vpack.c.bf16 %v417, %v413
    %v462 = vpack.c.bf16 %v418, %v414
    %v463 = vpack.c.bf16 %v419, %v415
    %v464 = vpack.c.bf16 %v424, %v420
    %v465 = vpack.c.bf16 %v425, %v421
    %v466 = vpack.c.bf16 %v426, %v422
    %v467 = vpack.c.bf16 %v427, %v423
    %v468 = vpack.c.bf16 %v432, %v428
    %v469 = vpack.c.bf16 %v433, %v429
    %v470 = vpack.c.bf16 %v434, %v430
    %v471 = vpack.c.bf16 %v435, %v431
    %v472 = vpack.c.bf16 %v440, %v436
    %v473 = vpack.c.bf16 %v441, %v437
    %v474 = vpack.c.bf16 %v442, %v438
    %v475 = vpack.c.bf16 %v443, %v439
    %v476 = vld [vmem:[#allocation2] sm:$0xff]
    %v477 = vld [vmem:[#allocation2 + $0x8] sm:$0xff]
    %v478 = vld [vmem:[#allocation2 + $0x10] sm:$0xff]
    %v479 = vld [vmem:[#allocation2 + $0x18] sm:$0xff]
    %v480 = vld [vmem:[#allocation2 + $0x20] sm:$0xff]
    %v481 = vld [vmem:[#allocation2 + $0x28] sm:$0xff]
    %v482 = vld [vmem:[#allocation2 + $0x30] sm:$0xff]
    %v483 = vld [vmem:[#allocation2 + $0x38] sm:$0xff]
    %v484 = vld [vmem:[#allocation2 + $0x40] sm:$0xff]
    %v485 = vld [vmem:[#allocation2 + $0x48] sm:$0xff]
    %v486 = vld [vmem:[#allocation2 + $0x50] sm:$0xff]
    %v487 = vld [vmem:[#allocation2 + $0x58] sm:$0xff]
    %v488 = vld [vmem:[#allocation2 + $0x60] sm:$0xff]
    %v489 = vld [vmem:[#allocation2 + $0x68] sm:$0xff]
    %v490 = vld [vmem:[#allocation2 + $0x70] sm:$0xff]
    %v491 = vld [vmem:[#allocation2 + $0x78] sm:$0xff]
    %v492 = vld [vmem:[#allocation2 + $0x80] sm:$0xff]
    %v493 = vld [vmem:[#allocation2 + $0x88] sm:$0xff]
    %v494 = vld [vmem:[#allocation2 + $0x90] sm:$0xff]
    %v495 = vld [vmem:[#allocation2 + $0x98] sm:$0xff]
    %v496 = vld [vmem:[#allocation2 + $0xa0] sm:$0xff]
    %v497 = vld [vmem:[#allocation2 + $0xa8] sm:$0xff]
    %v498 = vld [vmem:[#allocation2 + $0xb0] sm:$0xff]
    %v499 = vld [vmem:[#allocation2 + $0xb8] sm:$0xff]
    %v500 = vld [vmem:[#allocation2 + $0xc0] sm:$0xff]
    %v501 = vld [vmem:[#allocation2 + $0xc8] sm:$0xff]
    %v502 = vld [vmem:[#allocation2 + $0xd0] sm:$0xff]
    %v503 = vld [vmem:[#allocation2 + $0xd8] sm:$0xff]
    %v504 = vld [vmem:[#allocation2 + $0xe0] sm:$0xff]
    %v505 = vld [vmem:[#allocation2 + $0xe8] sm:$0xff]
    %v506 = vld [vmem:[#allocation2 + $0xf0] sm:$0xff]
    %v507 = vld [vmem:[#allocation2 + $0xf8] sm:$0xff]
    %v508 = vld [vmem:[#allocation2 + $0x100] sm:$0xff]
    %v509 = vld [vmem:[#allocation2 + $0x108] sm:$0xff]
    %v510 = vld [vmem:[#allocation2 + $0x110] sm:$0xff]
    %v511 = vld [vmem:[#allocation2 + $0x118] sm:$0xff]
    %v512 = vld [vmem:[#allocation2 + $0x120] sm:$0xff]
    %v513 = vld [vmem:[#allocation2 + $0x128] sm:$0xff]
    %v514 = vld [vmem:[#allocation2 + $0x130] sm:$0xff]
    %v515 = vld [vmem:[#allocation2 + $0x138] sm:$0xff]
    %v516 = vld [vmem:[#allocation2 + $0x140] sm:$0xff]
    %v517 = vld [vmem:[#allocation2 + $0x148] sm:$0xff]
    %v518 = vld [vmem:[#allocation2 + $0x150] sm:$0xff]
    %v519 = vld [vmem:[#allocation2 + $0x158] sm:$0xff]
    %v520 = vld [vmem:[#allocation2 + $0x160] sm:$0xff]
    %v521 = vld [vmem:[#allocation2 + $0x168] sm:$0xff]
    %v522 = vld [vmem:[#allocation2 + $0x170] sm:$0xff]
    %v523 = vld [vmem:[#allocation2 + $0x178] sm:$0xff]
    %v524 = vld [vmem:[#allocation2 + $0x180] sm:$0xff]
    %v525 = vld [vmem:[#allocation2 + $0x188] sm:$0xff]
    %v526 = vld [vmem:[#allocation2 + $0x190] sm:$0xff]
    %v527 = vld [vmem:[#allocation2 + $0x198] sm:$0xff]
    %v528 = vld [vmem:[#allocation2 + $0x1a0] sm:$0xff]
    %v529 = vld [vmem:[#allocation2 + $0x1a8] sm:$0xff]
    %v530 = vld [vmem:[#allocation2 + $0x1b0] sm:$0xff]
    %v531 = vld [vmem:[#allocation2 + $0x1b8] sm:$0xff]
    %v532 = vld [vmem:[#allocation2 + $0x1c0] sm:$0xff]
    %v533 = vld [vmem:[#allocation2 + $0x1c8] sm:$0xff]
    %v534 = vld [vmem:[#allocation2 + $0x1d0] sm:$0xff]
    %v535 = vld [vmem:[#allocation2 + $0x1d8] sm:$0xff]
    %v536 = vld [vmem:[#allocation2 + $0x1e0] sm:$0xff]
    %v537 = vld [vmem:[#allocation2 + $0x1e8] sm:$0xff]
    %v538 = vld [vmem:[#allocation2 + $0x1f0] sm:$0xff]
    %v539 = vld [vmem:[#allocation2 + $0x1f8] sm:$0xff]
    %v540 = vperm.slane %v71, 1
    %v541 = vperm.slane %v72, 1
    %v606 = vunpack.c.l.b16 %v476
    %v607 = vunpack.c.h.b16 %v476
    %v608 = vunpack.c.l.b16 %v477
    %v609 = vunpack.c.h.b16 %v477
    %v610 = vunpack.c.l.b16 %v478
    %v611 = vunpack.c.h.b16 %v478
    %v612 = vunpack.c.l.b16 %v479
    %v613 = vunpack.c.h.b16 %v479
    %v614 = vunpack.c.l.b16 %v480
    %v615 = vunpack.c.h.b16 %v480
    %v616 = vunpack.c.l.b16 %v481
    %v617 = vunpack.c.h.b16 %v481
    %v618 = vunpack.c.l.b16 %v482
    %v619 = vunpack.c.h.b16 %v482
    %v620 = vunpack.c.l.b16 %v483
    %v621 = vunpack.c.h.b16 %v483
    %v622 = vunpack.c.l.b16 %v484
    %v623 = vunpack.c.h.b16 %v484
    %v624 = vunpack.c.l.b16 %v485
    %v625 = vunpack.c.h.b16 %v485
    %v626 = vunpack.c.l.b16 %v486
    %v627 = vunpack.c.h.b16 %v486
    %v628 = vunpack.c.l.b16 %v487
    %v629 = vunpack.c.h.b16 %v487
    %v630 = vunpack.c.l.b16 %v488
    %v631 = vunpack.c.h.b16 %v488
    %v632 = vunpack.c.l.b16 %v489
    %v633 = vunpack.c.h.b16 %v489
    %v634 = vunpack.c.l.b16 %v490
    %v635 = vunpack.c.h.b16 %v490
    %v636 = vunpack.c.l.b16 %v491
    %v637 = vunpack.c.h.b16 %v491
    %v638 = vunpack.c.l.b16 %v492
    %v639 = vunpack.c.h.b16 %v492
    %v640 = vunpack.c.l.b16 %v493
    %v641 = vunpack.c.h.b16 %v493
    %v642 = vunpack.c.l.b16 %v494
    %v643 = vunpack.c.h.b16 %v494
    %v644 = vunpack.c.l.b16 %v495
    %v645 = vunpack.c.h.b16 %v495
    %v646 = vunpack.c.l.b16 %v496
    %v647 = vunpack.c.h.b16 %v496
    %v648 = vunpack.c.l.b16 %v497
    %v649 = vunpack.c.h.b16 %v497
    %v650 = vunpack.c.l.b16 %v498
    %v651 = vunpack.c.h.b16 %v498
    %v652 = vunpack.c.l.b16 %v499
    %v653 = vunpack.c.h.b16 %v499
    %v654 = vunpack.c.l.b16 %v500
    %v655 = vunpack.c.h.b16 %v500
    %v656 = vunpack.c.l.b16 %v501
    %v657 = vunpack.c.h.b16 %v501
    %v658 = vunpack.c.l.b16 %v502
    %v659 = vunpack.c.h.b16 %v502
    %v660 = vunpack.c.l.b16 %v503
    %v661 = vunpack.c.h.b16 %v503
    %v662 = vunpack.c.l.b16 %v504
    %v663 = vunpack.c.h.b16 %v504
    %v664 = vunpack.c.l.b16 %v505
    %v665 = vunpack.c.h.b16 %v505
    %v666 = vunpack.c.l.b16 %v506
    %v667 = vunpack.c.h.b16 %v506
    %v668 = vunpack.c.l.b16 %v507
    %v669 = vunpack.c.h.b16 %v507
    %v670 = vunpack.c.l.b16 %v508
    %v671 = vunpack.c.h.b16 %v508
    %v672 = vunpack.c.l.b16 %v509
    %v673 = vunpack.c.h.b16 %v509
    %v674 = vunpack.c.l.b16 %v510
    %v675 = vunpack.c.h.b16 %v510
    %v676 = vunpack.c.l.b16 %v511
    %v677 = vunpack.c.h.b16 %v511
    %v678 = vunpack.c.l.b16 %v512
    %v679 = vunpack.c.h.b16 %v512
    %v680 = vunpack.c.l.b16 %v513
    %v681 = vunpack.c.h.b16 %v513
    %v682 = vunpack.c.l.b16 %v514
    %v683 = vunpack.c.h.b16 %v514
    %v684 = vunpack.c.l.b16 %v515
    %v685 = vunpack.c.h.b16 %v515
    %v686 = vunpack.c.l.b16 %v516
    %v687 = vunpack.c.h.b16 %v516
    %v688 = vunpack.c.l.b16 %v517
    %v689 = vunpack.c.h.b16 %v517
    %v690 = vunpack.c.l.b16 %v518
    %v691 = vunpack.c.h.b16 %v518
    %v692 = vunpack.c.l.b16 %v519
    %v693 = vunpack.c.h.b16 %v519
    %v694 = vunpack.c.l.b16 %v520
    %v695 = vunpack.c.h.b16 %v520
    %v696 = vunpack.c.l.b16 %v521
    %v697 = vunpack.c.h.b16 %v521
    %v698 = vunpack.c.l.b16 %v522
    %v699 = vunpack.c.h.b16 %v522
    %v700 = vunpack.c.l.b16 %v523
    %v701 = vunpack.c.h.b16 %v523
    %v702 = vunpack.c.l.b16 %v524
    %v703 = vunpack.c.h.b16 %v524
    %v704 = vunpack.c.l.b16 %v525
    %v705 = vunpack.c.h.b16 %v525
    %v706 = vunpack.c.l.b16 %v526
    %v707 = vunpack.c.h.b16 %v526
    %v708 = vunpack.c.l.b16 %v527
    %v709 = vunpack.c.h.b16 %v527
    %v710 = vunpack.c.l.b16 %v528
    %v711 = vunpack.c.h.b16 %v528
    %v712 = vunpack.c.l.b16 %v529
    %v713 = vunpack.c.h.b16 %v529
    %v714 = vunpack.c.l.b16 %v530
    %v715 = vunpack.c.h.b16 %v530
    %v716 = vunpack.c.l.b16 %v531
    %v717 = vunpack.c.h.b16 %v531
    %v718 = vunpack.c.l.b16 %v532
    %v719 = vunpack.c.h.b16 %v532
    %v720 = vunpack.c.l.b16 %v533
    %v721 = vunpack.c.h.b16 %v533
    %v722 = vunpack.c.l.b16 %v534
    %v723 = vunpack.c.h.b16 %v534
    %v724 = vunpack.c.l.b16 %v535
    %v725 = vunpack.c.h.b16 %v535
    %v726 = vunpack.c.l.b16 %v536
    %v727 = vunpack.c.h.b16 %v536
    %v728 = vunpack.c.l.b16 %v537
    %v729 = vunpack.c.h.b16 %v537
    %v730 = vunpack.c.l.b16 %v538
    %v731 = vunpack.c.h.b16 %v538
    %v732 = vunpack.c.l.b16 %v539
    %v733 = vunpack.c.h.b16 %v539
    %v734 = vpack.c.b16 %v608, %v606
    %v735 = vpack.c.b16 %v609, %v607
    %v736 = vpack.c.b16 %v612, %v610
    %v737 = vpack.c.b16 %v613, %v611
    %v738 = vpack.c.b16 %v616, %v614
    %v739 = vpack.c.b16 %v617, %v615
    %v740 = vpack.c.b16 %v620, %v618
    %v741 = vpack.c.b16 %v621, %v619
    %v742 = vpack.c.b16 %v624, %v622
    %v743 = vpack.c.b16 %v625, %v623
    %v744 = vpack.c.b16 %v628, %v626
    %v745 = vpack.c.b16 %v629, %v627
    %v746 = vpack.c.b16 %v632, %v630
    %v747 = vpack.c.b16 %v633, %v631
    %v748 = vpack.c.b16 %v636, %v634
    %v749 = vpack.c.b16 %v637, %v635
    %v750 = vpack.c.b16 %v640, %v638
    %v751 = vpack.c.b16 %v641, %v639
    %v752 = vpack.c.b16 %v644, %v642
    %v753 = vpack.c.b16 %v645, %v643
    %v754 = vpack.c.b16 %v648, %v646
    %v755 = vpack.c.b16 %v649, %v647
    %v756 = vpack.c.b16 %v652, %v650
    %v757 = vpack.c.b16 %v653, %v651
    %v758 = vpack.c.b16 %v656, %v654
    %v759 = vpack.c.b16 %v657, %v655
    %v760 = vpack.c.b16 %v660, %v658
    %v761 = vpack.c.b16 %v661, %v659
    %v762 = vpack.c.b16 %v664, %v662
    %v763 = vpack.c.b16 %v665, %v663
    %v764 = vpack.c.b16 %v668, %v666
    %v765 = vpack.c.b16 %v669, %v667
    %v766 = vpack.c.b16 %v672, %v670
    %v767 = vpack.c.b16 %v673, %v671
    %v768 = vpack.c.b16 %v676, %v674
    %v769 = vpack.c.b16 %v677, %v675
    %v770 = vpack.c.b16 %v680, %v678
    %v771 = vpack.c.b16 %v681, %v679
    %v772 = vpack.c.b16 %v684, %v682
    %v773 = vpack.c.b16 %v685, %v683
    %v774 = vpack.c.b16 %v688, %v686
    %v775 = vpack.c.b16 %v689, %v687
    %v776 = vpack.c.b16 %v692, %v690
    %v777 = vpack.c.b16 %v693, %v691
    %v778 = vpack.c.b16 %v696, %v694
    %v779 = vpack.c.b16 %v697, %v695
    %v780 = vpack.c.b16 %v700, %v698
    %v781 = vpack.c.b16 %v701, %v699
    %v782 = vpack.c.b16 %v704, %v702
    %v783 = vpack.c.b16 %v705, %v703
    %v784 = vpack.c.b16 %v708, %v706
    %v785 = vpack.c.b16 %v709, %v707
    %v786 = vpack.c.b16 %v712, %v710
    %v787 = vpack.c.b16 %v713, %v711
    %v788 = vpack.c.b16 %v716, %v714
    %v789 = vpack.c.b16 %v717, %v715
    %v790 = vpack.c.b16 %v720, %v718
    %v791 = vpack.c.b16 %v721, %v719
    %v792 = vpack.c.b16 %v724, %v722
    %v793 = vpack.c.b16 %v725, %v723
    %v794 = vpack.c.b16 %v728, %v726
    %v795 = vpack.c.b16 %v729, %v727
    %v796 = vpack.c.b16 %v732, %v730
    %v797 = vpack.c.b16 %v733, %v731
    %862 = vmatpush.bf16.msra.mxu0 %v748
    %863 = vmatpush.bf16.msra.mxu0 %v746
    %864 = vmatpush.bf16.msra.mxu0 %v744
    %865 = vmatpush.bf16.msra.mxu0 %v742
    %866 = vmatpush.bf16.msra.mxu0 %v740
    %867 = vmatpush.bf16.msra.mxu0 %v738
    %868 = vmatpush.bf16.msra.mxu0 %v736
    %869 = vmatpush.bf16.msra.mxu0 %v734
    %870 = vmatmul.bf16.gmra.mxu0 %v444
    %v871 = vpop.f32.mrf.mxu0
    %v872 = vadd.f32 %v540, %v871
    %v873 = vpop.f32.mrf.mxu0
    %v874 = vadd.f32 %v540, %v873
    %875 = vmatmul.bf16.gmra.mxu0 %v448
    %v876 = vpop.f32.mrf.mxu0
    %v877 = vadd.f32 %v540, %v876
    %v878 = vpop.f32.mrf.mxu0
    %v879 = vadd.f32 %v540, %v878
    %880 = vmatmul.bf16.gmra.mxu0 %v452
    %v881 = vpop.f32.mrf.mxu0
    %v882 = vadd.f32 %v540, %v881
    %v883 = vpop.f32.mrf.mxu0
    %v884 = vadd.f32 %v540, %v883
    %885 = vmatmul.bf16.gmra.mxu0 %v456
    %v886 = vpop.f32.mrf.mxu0
    %v887 = vadd.f32 %v540, %v886
    %v888 = vpop.f32.mrf.mxu0
    %v889 = vadd.f32 %v540, %v888
    %890 = vmatmul.bf16.gmra.mxu0 %v460
    %v891 = vpop.f32.mrf.mxu0
    %v892 = vadd.f32 %v540, %v891
    %v893 = vpop.f32.mrf.mxu0
    %v894 = vadd.f32 %v540, %v893
    %895 = vmatmul.bf16.gmra.mxu0 %v464
    %v896 = vpop.f32.mrf.mxu0
    %v897 = vadd.f32 %v540, %v896
    %v898 = vpop.f32.mrf.mxu0
    %v899 = vadd.f32 %v540, %v898
    %900 = vmatmul.bf16.gmra.mxu0 %v468
    %v901 = vpop.f32.mrf.mxu0
    %v902 = vadd.f32 %v540, %v901
    %v903 = vpop.f32.mrf.mxu0
    %v904 = vadd.f32 %v540, %v903
    %905 = vmatmul.bf16.gmra.mxu0 %v472
    %v906 = vpop.f32.mrf.mxu0
    %v907 = vadd.f32 %v540, %v906
    %v908 = vpop.f32.mrf.mxu0
    %v909 = vadd.f32 %v540, %v908
    %910 = vdwg.mxu0
    %911 = vmatpush.bf16.msra.mxu0 %v764
    %912 = vmatpush.bf16.msra.mxu0 %v762
    %913 = vmatpush.bf16.msra.mxu0 %v760
    %914 = vmatpush.bf16.msra.mxu0 %v758
    %915 = vmatpush.bf16.msra.mxu0 %v756
    %916 = vmatpush.bf16.msra.mxu0 %v754
    %917 = vmatpush.bf16.msra.mxu0 %v752
    %918 = vmatpush.bf16.msra.mxu0 %v750
    %919 = vmatmul.bf16.gmra.mxu0 %v445
    %v920 = vpop.f32.mrf.mxu0
    %v921 = vadd.f32 %v872, %v920
    %v922 = vpop.f32.mrf.mxu0
    %v923 = vadd.f32 %v874, %v922
    %924 = vmatmul.bf16.gmra.mxu0 %v449
    %v925 = vpop.f32.mrf.mxu0
    %v926 = vadd.f32 %v877, %v925
    %v927 = vpop.f32.mrf.mxu0
    %v928 = vadd.f32 %v879, %v927
    %929 = vmatmul.bf16.gmra.mxu0 %v453
    %v930 = vpop.f32.mrf.mxu0
    %v931 = vadd.f32 %v882, %v930
    %v932 = vpop.f32.mrf.mxu0
    %v933 = vadd.f32 %v884, %v932
    %934 = vmatmul.bf16.gmra.mxu0 %v457
    %v935 = vpop.f32.mrf.mxu0
    %v936 = vadd.f32 %v887, %v935
    %v937 = vpop.f32.mrf.mxu0
    %v938 = vadd.f32 %v889, %v937
    %939 = vmatmul.bf16.gmra.mxu0 %v461
    %v940 = vpop.f32.mrf.mxu0
    %v941 = vadd.f32 %v892, %v940
    %v942 = vpop.f32.mrf.mxu0
    %v943 = vadd.f32 %v894, %v942
    %944 = vmatmul.bf16.gmra.mxu0 %v465
    %v945 = vpop.f32.mrf.mxu0
    %v946 = vadd.f32 %v897, %v945
    %v947 = vpop.f32.mrf.mxu0
    %v948 = vadd.f32 %v899, %v947
    %949 = vmatmul.bf16.gmra.mxu0 %v469
    %v950 = vpop.f32.mrf.mxu0
    %v951 = vadd.f32 %v902, %v950
    %v952 = vpop.f32.mrf.mxu0
    %v953 = vadd.f32 %v904, %v952
    %954 = vmatmul.bf16.gmra.mxu0 %v473
    %v955 = vpop.f32.mrf.mxu0
    %v956 = vadd.f32 %v907, %v955
    %v957 = vpop.f32.mrf.mxu0
    %v958 = vadd.f32 %v909, %v957
    %959 = vdwg.mxu0
    %960 = vmatpush.bf16.msra.mxu0 %v780
    %961 = vmatpush.bf16.msra.mxu0 %v778
    %962 = vmatpush.bf16.msra.mxu0 %v776
    %963 = vmatpush.bf16.msra.mxu0 %v774
    %964 = vmatpush.bf16.msra.mxu0 %v772
    %965 = vmatpush.bf16.msra.mxu0 %v770
    %966 = vmatpush.bf16.msra.mxu0 %v768
    %967 = vmatpush.bf16.msra.mxu0 %v766
    %968 = vmatmul.bf16.gmra.mxu0 %v446
    %v969 = vpop.f32.mrf.mxu0
    %v970 = vadd.f32 %v921, %v969
    %v971 = vpop.f32.mrf.mxu0
    %v972 = vadd.f32 %v923, %v971
    %973 = vmatmul.bf16.gmra.mxu0 %v450
    %v974 = vpop.f32.mrf.mxu0
    %v975 = vadd.f32 %v926, %v974
    %v976 = vpop.f32.mrf.mxu0
    %v977 = vadd.f32 %v928, %v976
    %978 = vmatmul.bf16.gmra.mxu0 %v454
    %v979 = vpop.f32.mrf.mxu0
    %v980 = vadd.f32 %v931, %v979
    %v981 = vpop.f32.mrf.mxu0
    %v982 = vadd.f32 %v933, %v981
    %983 = vmatmul.bf16.gmra.mxu0 %v458
    %v984 = vpop.f32.mrf.mxu0
    %v985 = vadd.f32 %v936, %v984
    %v986 = vpop.f32.mrf.mxu0
    %v987 = vadd.f32 %v938, %v986
    %988 = vmatmul.bf16.gmra.mxu0 %v462
    %v989 = vpop.f32.mrf.mxu0
    %v990 = vadd.f32 %v941, %v989
    %v991 = vpop.f32.mrf.mxu0
    %v992 = vadd.f32 %v943, %v991
    %993 = vmatmul.bf16.gmra.mxu0 %v466
    %v994 = vpop.f32.mrf.mxu0
    %v995 = vadd.f32 %v946, %v994
    %v996 = vpop.f32.mrf.mxu0
    %v997 = vadd.f32 %v948, %v996
    %998 = vmatmul.bf16.gmra.mxu0 %v470
    %v999 = vpop.f32.mrf.mxu0
    %v1000 = vadd.f32 %v951, %v999
    %v1001 = vpop.f32.mrf.mxu0
    %v1002 = vadd.f32 %v953, %v1001
    %1003 = vmatmul.bf16.gmra.mxu0 %v474
    %v1004 = vpop.f32.mrf.mxu0
    %v1005 = vadd.f32 %v956, %v1004
    %v1006 = vpop.f32.mrf.mxu0
    %v1007 = vadd.f32 %v958, %v1006
    %1008 = vdwg.mxu0
    %1009 = vmatpush.bf16.msra.mxu0 %v796
    %1010 = vmatpush.bf16.msra.mxu0 %v794
    %1011 = vmatpush.bf16.msra.mxu0 %v792
    %1012 = vmatpush.bf16.msra.mxu0 %v790
    %1013 = vmatpush.bf16.msra.mxu0 %v788
    %1014 = vmatpush.bf16.msra.mxu0 %v786
    %1015 = vmatpush.bf16.msra.mxu0 %v784
    %1016 = vmatpush.bf16.msra.mxu0 %v782
    %1017 = vmatmul.bf16.gmra.mxu0 %v447
    %v1018 = vpop.f32.mrf.mxu0
    %v1019 = vadd.f32 %v970, %v1018
    %v1020 = vpop.f32.mrf.mxu0
    %v1021 = vadd.f32 %v972, %v1020
    %1022 = vmatmul.bf16.gmra.mxu0 %v451
    %v1023 = vpop.f32.mrf.mxu0
    %v1024 = vadd.f32 %v975, %v1023
    %v1025 = vpop.f32.mrf.mxu0
    %v1026 = vadd.f32 %v977, %v1025
    %1027 = vmatmul.bf16.gmra.mxu0 %v455
    %v1028 = vpop.f32.mrf.mxu0
    %v1029 = vadd.f32 %v980, %v1028
    %v1030 = vpop.f32.mrf.mxu0
    %v1031 = vadd.f32 %v982, %v1030
    %1032 = vmatmul.bf16.gmra.mxu0 %v459
    %v1033 = vpop.f32.mrf.mxu0
    %v1034 = vadd.f32 %v985, %v1033
    %v1035 = vpop.f32.mrf.mxu0
    %v1036 = vadd.f32 %v987, %v1035
    %1037 = vmatmul.bf16.gmra.mxu0 %v463
    %v1038 = vpop.f32.mrf.mxu0
    %v1039 = vadd.f32 %v990, %v1038
    %v1040 = vpop.f32.mrf.mxu0
    %v1041 = vadd.f32 %v992, %v1040
    %1042 = vmatmul.bf16.gmra.mxu0 %v467
    %v1043 = vpop.f32.mrf.mxu0
    %v1044 = vadd.f32 %v995, %v1043
    %v1045 = vpop.f32.mrf.mxu0
    %v1046 = vadd.f32 %v997, %v1045
    %1047 = vmatmul.bf16.gmra.mxu0 %v471
    %v1048 = vpop.f32.mrf.mxu0
    %v1049 = vadd.f32 %v1000, %v1048
    %v1050 = vpop.f32.mrf.mxu0
    %v1051 = vadd.f32 %v1002, %v1050
    %1052 = vmatmul.bf16.gmra.mxu0 %v475
    %v1053 = vpop.f32.mrf.mxu0
    %v1054 = vadd.f32 %v1005, %v1053
    %v1055 = vpop.f32.mrf.mxu0
    %v1056 = vadd.f32 %v1007, %v1055
    %1057 = vdwg.mxu0
    %1058 = vmatpush.bf16.msra.mxu0 %v749
    %1059 = vmatpush.bf16.msra.mxu0 %v747
    %1060 = vmatpush.bf16.msra.mxu0 %v745
    %1061 = vmatpush.bf16.msra.mxu0 %v743
    %1062 = vmatpush.bf16.msra.mxu0 %v741
    %1063 = vmatpush.bf16.msra.mxu0 %v739
    %1064 = vmatpush.bf16.msra.mxu0 %v737
    %1065 = vmatpush.bf16.msra.mxu0 %v735
    %1066 = vmatmul.bf16.gmra.mxu0 %v444
    %v1067 = vpop.f32.mrf.mxu0
    %v1068 = vadd.f32 %v541, %v1067
    %v1069 = vpop.f32.mrf.mxu0
    %v1070 = vadd.f32 %v541, %v1069
    %1071 = vmatmul.bf16.gmra.mxu0 %v448
    %v1072 = vpop.f32.mrf.mxu0
    %v1073 = vadd.f32 %v541, %v1072
    %v1074 = vpop.f32.mrf.mxu0
    %v1075 = vadd.f32 %v541, %v1074
    %1076 = vmatmul.bf16.gmra.mxu0 %v452
    %v1077 = vpop.f32.mrf.mxu0
    %v1078 = vadd.f32 %v541, %v1077
    %v1079 = vpop.f32.mrf.mxu0
    %v1080 = vadd.f32 %v541, %v1079
    %1081 = vmatmul.bf16.gmra.mxu0 %v456
    %v1082 = vpop.f32.mrf.mxu0
    %v1083 = vadd.f32 %v541, %v1082
    %v1084 = vpop.f32.mrf.mxu0
    %v1085 = vadd.f32 %v541, %v1084
    %1086 = vmatmul.bf16.gmra.mxu0 %v460
    %v1087 = vpop.f32.mrf.mxu0
    %v1088 = vadd.f32 %v541, %v1087
    %v1089 = vpop.f32.mrf.mxu0
    %v1090 = vadd.f32 %v541, %v1089
    %1091 = vmatmul.bf16.gmra.mxu0 %v464
    %v1092 = vpop.f32.mrf.mxu0
    %v1093 = vadd.f32 %v541, %v1092
    %v1094 = vpop.f32.mrf.mxu0
    %v1095 = vadd.f32 %v541, %v1094
    %1096 = vmatmul.bf16.gmra.mxu0 %v468
    %v1097 = vpop.f32.mrf.mxu0
    %v1098 = vadd.f32 %v541, %v1097
    %v1099 = vpop.f32.mrf.mxu0
    %v1100 = vadd.f32 %v541, %v1099
    %1101 = vmatmul.bf16.gmra.mxu0 %v472
    %v1102 = vpop.f32.mrf.mxu0
    %v1103 = vadd.f32 %v541, %v1102
    %v1104 = vpop.f32.mrf.mxu0
    %v1105 = vadd.f32 %v541, %v1104
    %1106 = vdwg.mxu0
    %1107 = vmatpush.bf16.msra.mxu0 %v765
    %1108 = vmatpush.bf16.msra.mxu0 %v763
    %1109 = vmatpush.bf16.msra.mxu0 %v761
    %1110 = vmatpush.bf16.msra.mxu0 %v759
    %1111 = vmatpush.bf16.msra.mxu0 %v757
    %1112 = vmatpush.bf16.msra.mxu0 %v755
    %1113 = vmatpush.bf16.msra.mxu0 %v753
    %1114 = vmatpush.bf16.msra.mxu0 %v751
    %1115 = vmatmul.bf16.gmra.mxu0 %v445
    %v1116 = vpop.f32.mrf.mxu0
    %v1117 = vadd.f32 %v1068, %v1116
    %v1118 = vpop.f32.mrf.mxu0
    %v1119 = vadd.f32 %v1070, %v1118
    %1120 = vmatmul.bf16.gmra.mxu0 %v449
    %v1121 = vpop.f32.mrf.mxu0
    %v1122 = vadd.f32 %v1073, %v1121
    %v1123 = vpop.f32.mrf.mxu0
    %v1124 = vadd.f32 %v1075, %v1123
    %1125 = vmatmul.bf16.gmra.mxu0 %v453
    %v1126 = vpop.f32.mrf.mxu0
    %v1127 = vadd.f32 %v1078, %v1126
    %v1128 = vpop.f32.mrf.mxu0
    %v1129 = vadd.f32 %v1080, %v1128
    %1130 = vmatmul.bf16.gmra.mxu0 %v457
    %v1131 = vpop.f32.mrf.mxu0
    %v1132 = vadd.f32 %v1083, %v1131
    %v1133 = vpop.f32.mrf.mxu0
    %v1134 = vadd.f32 %v1085, %v1133
    %1135 = vmatmul.bf16.gmra.mxu0 %v461
    %v1136 = vpop.f32.mrf.mxu0
    %v1137 = vadd.f32 %v1088, %v1136
    %v1138 = vpop.f32.mrf.mxu0
    %v1139 = vadd.f32 %v1090, %v1138
    %1140 = vmatmul.bf16.gmra.mxu0 %v465
    %v1141 = vpop.f32.mrf.mxu0
    %v1142 = vadd.f32 %v1093, %v1141
    %v1143 = vpop.f32.mrf.mxu0
    %v1144 = vadd.f32 %v1095, %v1143
    %1145 = vmatmul.bf16.gmra.mxu0 %v469
    %v1146 = vpop.f32.mrf.mxu0
    %v1147 = vadd.f32 %v1098, %v1146
    %v1148 = vpop.f32.mrf.mxu0
    %v1149 = vadd.f32 %v1100, %v1148
    %1150 = vmatmul.bf16.gmra.mxu0 %v473
    %v1151 = vpop.f32.mrf.mxu0
    %v1152 = vadd.f32 %v1103, %v1151
    %v1153 = vpop.f32.mrf.mxu0
    %v1154 = vadd.f32 %v1105, %v1153
    %1155 = vdwg.mxu0
    %1156 = vmatpush.bf16.msra.mxu0 %v781
    %1157 = vmatpush.bf16.msra.mxu0 %v779
    %1158 = vmatpush.bf16.msra.mxu0 %v777
    %1159 = vmatpush.bf16.msra.mxu0 %v775
    %1160 = vmatpush.bf16.msra.mxu0 %v773
    %1161 = vmatpush.bf16.msra.mxu0 %v771
    %1162 = vmatpush.bf16.msra.mxu0 %v769
    %1163 = vmatpush.bf16.msra.mxu0 %v767
    %1164 = vmatmul.bf16.gmra.mxu0 %v446
    %v1165 = vpop.f32.mrf.mxu0
    %v1166 = vadd.f32 %v1117, %v1165
    %v1167 = vpop.f32.mrf.mxu0
    %v1168 = vadd.f32 %v1119, %v1167
    %1169 = vmatmul.bf16.gmra.mxu0 %v450
    %v1170 = vpop.f32.mrf.mxu0
    %v1171 = vadd.f32 %v1122, %v1170
    %v1172 = vpop.f32.mrf.mxu0
    %v1173 = vadd.f32 %v1124, %v1172
    %1174 = vmatmul.bf16.gmra.mxu0 %v454
    %v1175 = vpop.f32.mrf.mxu0
    %v1176 = vadd.f32 %v1127, %v1175
    %v1177 = vpop.f32.mrf.mxu0
    %v1178 = vadd.f32 %v1129, %v1177
    %1179 = vmatmul.bf16.gmra.mxu0 %v458
    %v1180 = vpop.f32.mrf.mxu0
    %v1181 = vadd.f32 %v1132, %v1180
    %v1182 = vpop.f32.mrf.mxu0
    %v1183 = vadd.f32 %v1134, %v1182
    %1184 = vmatmul.bf16.gmra.mxu0 %v462
    %v1185 = vpop.f32.mrf.mxu0
    %v1186 = vadd.f32 %v1137, %v1185
    %v1187 = vpop.f32.mrf.mxu0
    %v1188 = vadd.f32 %v1139, %v1187
    %1189 = vmatmul.bf16.gmra.mxu0 %v466
    %v1190 = vpop.f32.mrf.mxu0
    %v1191 = vadd.f32 %v1142, %v1190
    %v1192 = vpop.f32.mrf.mxu0
    %v1193 = vadd.f32 %v1144, %v1192
    %1194 = vmatmul.bf16.gmra.mxu0 %v470
    %v1195 = vpop.f32.mrf.mxu0
    %v1196 = vadd.f32 %v1147, %v1195
    %v1197 = vpop.f32.mrf.mxu0
    %v1198 = vadd.f32 %v1149, %v1197
    %1199 = vmatmul.bf16.gmra.mxu0 %v474
    %v1200 = vpop.f32.mrf.mxu0
    %v1201 = vadd.f32 %v1152, %v1200
    %v1202 = vpop.f32.mrf.mxu0
    %v1203 = vadd.f32 %v1154, %v1202
    %1204 = vdwg.mxu0
    %1205 = vmatpush.bf16.msra.mxu0 %v797
    %1206 = vmatpush.bf16.msra.mxu0 %v795
    %1207 = vmatpush.bf16.msra.mxu0 %v793
    %1208 = vmatpush.bf16.msra.mxu0 %v791
    %1209 = vmatpush.bf16.msra.mxu0 %v789
    %1210 = vmatpush.bf16.msra.mxu0 %v787
    %1211 = vmatpush.bf16.msra.mxu0 %v785
    %1212 = vmatpush.bf16.msra.mxu0 %v783
    %1213 = vmatmul.bf16.gmra.mxu0 %v447
    %v1214 = vpop.f32.mrf.mxu0
    %v1215 = vadd.f32 %v1166, %v1214
    %v1216 = vpop.f32.mrf.mxu0
    %v1217 = vadd.f32 %v1168, %v1216
    %1218 = vmatmul.bf16.gmra.mxu0 %v451
    %v1219 = vpop.f32.mrf.mxu0
    %v1220 = vadd.f32 %v1171, %v1219
    %v1221 = vpop.f32.mrf.mxu0
    %v1222 = vadd.f32 %v1173, %v1221
    %1223 = vmatmul.bf16.gmra.mxu0 %v455
    %v1224 = vpop.f32.mrf.mxu0
    %v1225 = vadd.f32 %v1176, %v1224
    %v1226 = vpop.f32.mrf.mxu0
    %v1227 = vadd.f32 %v1178, %v1226
    %1228 = vmatmul.bf16.gmra.mxu0 %v459
    %v1229 = vpop.f32.mrf.mxu0
    %v1230 = vadd.f32 %v1181, %v1229
    %v1231 = vpop.f32.mrf.mxu0
    %v1232 = vadd.f32 %v1183, %v1231
    %1233 = vmatmul.bf16.gmra.mxu0 %v463
    %v1234 = vpop.f32.mrf.mxu0
    %v1235 = vadd.f32 %v1186, %v1234
    %v1236 = vpop.f32.mrf.mxu0
    %v1237 = vadd.f32 %v1188, %v1236
    %1238 = vmatmul.bf16.gmra.mxu0 %v467
    %v1239 = vpop.f32.mrf.mxu0
    %v1240 = vadd.f32 %v1191, %v1239
    %v1241 = vpop.f32.mrf.mxu0
    %v1242 = vadd.f32 %v1193, %v1241
    %1243 = vmatmul.bf16.gmra.mxu0 %v471
    %v1244 = vpop.f32.mrf.mxu0
    %v1245 = vadd.f32 %v1196, %v1244
    %v1246 = vpop.f32.mrf.mxu0
    %v1247 = vadd.f32 %v1198, %v1246
    %1248 = vmatmul.bf16.gmra.mxu0 %v475
    %v1249 = vpop.f32.mrf.mxu0
    %v1250 = vadd.f32 %v1201, %v1249
    %v1251 = vpop.f32.mrf.mxu0
    %v1252 = vadd.f32 %v1203, %v1251
    %1253 = vdwg.mxu0
    %v1254 = vmax.f32 %v1019, 0.0
    %v1255 = vmax.f32 %v1215, 0.0
    %v1256 = vmax.f32 %v1021, 0.0
    %v1257 = vmax.f32 %v1217, 0.0
    %v1258 = vmax.f32 %v1024, 0.0
    %v1259 = vmax.f32 %v1220, 0.0
    %v1260 = vmax.f32 %v1026, 0.0
    %v1261 = vmax.f32 %v1222, 0.0
    %v1262 = vmax.f32 %v1029, 0.0
    %v1263 = vmax.f32 %v1225, 0.0
    %v1264 = vmax.f32 %v1031, 0.0
    %v1265 = vmax.f32 %v1227, 0.0
    %v1266 = vmax.f32 %v1034, 0.0
    %v1267 = vmax.f32 %v1230, 0.0
    %v1268 = vmax.f32 %v1036, 0.0
    %v1269 = vmax.f32 %v1232, 0.0
    %v1270 = vmax.f32 %v1039, 0.0
    %v1271 = vmax.f32 %v1235, 0.0
    %v1272 = vmax.f32 %v1041, 0.0
    %v1273 = vmax.f32 %v1237, 0.0
    %v1274 = vmax.f32 %v1044, 0.0
    %v1275 = vmax.f32 %v1240, 0.0
    %v1276 = vmax.f32 %v1046, 0.0
    %v1277 = vmax.f32 %v1242, 0.0
    %v1278 = vmax.f32 %v1049, 0.0
    %v1279 = vmax.f32 %v1245, 0.0
    %v1280 = vmax.f32 %v1051, 0.0
    %v1281 = vmax.f32 %v1247, 0.0
    %v1282 = vmax.f32 %v1054, 0.0
    %v1283 = vmax.f32 %v1250, 0.0
    %v1284 = vmax.f32 %v1056, 0.0
    %v1285 = vmax.f32 %v1252, 0.0
    %v1286 = vpack.c.bf16 %v1256, %v1254
    %v1287 = vpack.c.bf16 %v1257, %v1255
    %v1288 = vpack.c.bf16 %v1260, %v1258
    %v1289 = vpack.c.bf16 %v1261, %v1259
    %v1290 = vpack.c.bf16 %v1264, %v1262
    %v1291 = vpack.c.bf16 %v1265, %v1263
    %v1292 = vpack.c.bf16 %v1268, %v1266
    %v1293 = vpack.c.bf16 %v1269, %v1267
    %v1294 = vpack.c.bf16 %v1272, %v1270
    %v1295 = vpack.c.bf16 %v1273, %v1271
    %v1296 = vpack.c.bf16 %v1276, %v1274
    %v1297 = vpack.c.bf16 %v1277, %v1275
    %v1298 = vpack.c.bf16 %v1280, %v1278
    %v1299 = vpack.c.bf16 %v1281, %v1279
    %v1300 = vpack.c.bf16 %v1284, %v1282
    %v1301 = vpack.c.bf16 %v1285, %v1283
    %v1302 = vld [vmem:[#allocation4] sm:$0xf]
    %v1303 = vld [vmem:[#allocation4 + $0x4] sm:$0xf]
    %v1304 = vld [vmem:[#allocation4 + $0x8] sm:$0xf]
    %v1305 = vld [vmem:[#allocation4 + $0xc] sm:$0xf]
    %v1306 = vld [vmem:[#allocation4 + $0x10] sm:$0xf]
    %v1307 = vld [vmem:[#allocation4 + $0x14] sm:$0xf]
    %v1308 = vld [vmem:[#allocation4 + $0x18] sm:$0xf]
    %v1309 = vld [vmem:[#allocation4 + $0x1c] sm:$0xf]
    %v1310 = vld [vmem:[#allocation4 + $0x20] sm:$0xf]
    %v1311 = vld [vmem:[#allocation4 + $0x24] sm:$0xf]
    %v1312 = vld [vmem:[#allocation4 + $0x28] sm:$0xf]
    %v1313 = vld [vmem:[#allocation4 + $0x2c] sm:$0xf]
    %v1314 = vld [vmem:[#allocation4 + $0x30] sm:$0xf]
    %v1315 = vld [vmem:[#allocation4 + $0x34] sm:$0xf]
    %v1316 = vld [vmem:[#allocation4 + $0x38] sm:$0xf]
    %v1317 = vld [vmem:[#allocation4 + $0x3c] sm:$0xf]
    %v1318 = vld [vmem:[#allocation4 + $0x40] sm:$0xf]
    %v1319 = vld [vmem:[#allocation4 + $0x44] sm:$0xf]
    %v1320 = vld [vmem:[#allocation4 + $0x48] sm:$0xf]
    %v1321 = vld [vmem:[#allocation4 + $0x4c] sm:$0xf]
    %v1322 = vld [vmem:[#allocation4 + $0x50] sm:$0xf]
    %v1323 = vld [vmem:[#allocation4 + $0x54] sm:$0xf]
    %v1324 = vld [vmem:[#allocation4 + $0x58] sm:$0xf]
    %v1325 = vld [vmem:[#allocation4 + $0x5c] sm:$0xf]
    %v1326 = vld [vmem:[#allocation4 + $0x60] sm:$0xf]
    %v1327 = vld [vmem:[#allocation4 + $0x64] sm:$0xf]
    %v1328 = vld [vmem:[#allocation4 + $0x68] sm:$0xf]
    %v1329 = vld [vmem:[#allocation4 + $0x6c] sm:$0xf]
    %v1330 = vld [vmem:[#allocation4 + $0x70] sm:$0xf]
    %v1331 = vld [vmem:[#allocation4 + $0x74] sm:$0xf]
    %v1332 = vld [vmem:[#allocation4 + $0x78] sm:$0xf]
    %v1333 = vld [vmem:[#allocation4 + $0x7c] sm:$0xf]
    %v1334 = vperm.slane %v71, 2
    %v1367 = vunpack.c.l.b16 %v1302
    %v1368 = vunpack.c.l.b16 %v1303
    %v1369 = vunpack.c.l.b16 %v1304
    %v1370 = vunpack.c.l.b16 %v1305
    %v1371 = vunpack.c.l.b16 %v1306
    %v1372 = vunpack.c.l.b16 %v1307
    %v1373 = vunpack.c.l.b16 %v1308
    %v1374 = vunpack.c.l.b16 %v1309
    %v1375 = vunpack.c.l.b16 %v1310
    %v1376 = vunpack.c.l.b16 %v1311
    %v1377 = vunpack.c.l.b16 %v1312
    %v1378 = vunpack.c.l.b16 %v1313
    %v1379 = vunpack.c.l.b16 %v1314
    %v1380 = vunpack.c.l.b16 %v1315
    %v1381 = vunpack.c.l.b16 %v1316
    %v1382 = vunpack.c.l.b16 %v1317
    %v1383 = vunpack.c.l.b16 %v1318
    %v1384 = vunpack.c.l.b16 %v1319
    %v1385 = vunpack.c.l.b16 %v1320
    %v1386 = vunpack.c.l.b16 %v1321
    %v1387 = vunpack.c.l.b16 %v1322
    %v1388 = vunpack.c.l.b16 %v1323
    %v1389 = vunpack.c.l.b16 %v1324
    %v1390 = vunpack.c.l.b16 %v1325
    %v1391 = vunpack.c.l.b16 %v1326
    %v1392 = vunpack.c.l.b16 %v1327
    %v1393 = vunpack.c.l.b16 %v1328
    %v1394 = vunpack.c.l.b16 %v1329
    %v1395 = vunpack.c.l.b16 %v1330
    %v1396 = vunpack.c.l.b16 %v1331
    %v1397 = vunpack.c.l.b16 %v1332
    %v1398 = vunpack.c.l.b16 %v1333
    %v1399 = vpack.c.b16 %v1368, %v1367
    %v1400 = vpack.c.b16 %v1370, %v1369
    %v1401 = vpack.c.b16 %v1372, %v1371
    %v1402 = vpack.c.b16 %v1374, %v1373
    %v1403 = vpack.c.b16 %v1376, %v1375
    %v1404 = vpack.c.b16 %v1378, %v1377
    %v1405 = vpack.c.b16 %v1380, %v1379
    %v1406 = vpack.c.b16 %v1382, %v1381
    %v1407 = vpack.c.b16 %v1384, %v1383
    %v1408 = vpack.c.b16 %v1386, %v1385
    %v1409 = vpack.c.b16 %v1388, %v1387
    %v1410 = vpack.c.b16 %v1390, %v1389
    %v1411 = vpack.c.b16 %v1392, %v1391
    %v1412 = vpack.c.b16 %v1394, %v1393
    %v1413 = vpack.c.b16 %v1396, %v1395
    %v1414 = vpack.c.b16 %v1398, %v1397
    %1431 = vmatpush.bf16.msra.mxu0 %v1406
    %1432 = vmatpush.bf16.msra.mxu0 %v1405
    %1433 = vmatpush.bf16.msra.mxu0 %v1404
    %1434 = vmatpush.bf16.msra.mxu0 %v1403
    %1435 = vmatpush.bf16.msra.mxu0 %v1402
    %1436 = vmatpush.bf16.msra.mxu0 %v1401
    %1437 = vmatpush.bf16.msra.mxu0 %v1400
    %1438 = vmatpush.bf16.msra.mxu0 %v1399
    %1439 = vmatmul.bf16.gmra.mxu0 %v1286
    %v1440 = vpop.f32.mrf.mxu0
    %v1441 = vadd.f32 %v1334, %v1440
    %v1442 = vpop.f32.mrf.mxu0
    %v1443 = vadd.f32 %v1334, %v1442
    %1444 = vmatmul.bf16.gmra.mxu0 %v1288
    %v1445 = vpop.f32.mrf.mxu0
    %v1446 = vadd.f32 %v1334, %v1445
    %v1447 = vpop.f32.mrf.mxu0
    %v1448 = vadd.f32 %v1334, %v1447
    %1449 = vmatmul.bf16.gmra.mxu0 %v1290
    %v1450 = vpop.f32.mrf.mxu0
    %v1451 = vadd.f32 %v1334, %v1450
    %v1452 = vpop.f32.mrf.mxu0
    %v1453 = vadd.f32 %v1334, %v1452
    %1454 = vmatmul.bf16.gmra.mxu0 %v1292
    %v1455 = vpop.f32.mrf.mxu0
    %v1456 = vadd.f32 %v1334, %v1455
    %v1457 = vpop.f32.mrf.mxu0
    %v1458 = vadd.f32 %v1334, %v1457
    %1459 = vmatmul.bf16.gmra.mxu0 %v1294
    %v1460 = vpop.f32.mrf.mxu0
    %v1461 = vadd.f32 %v1334, %v1460
    %v1462 = vpop.f32.mrf.mxu0
    %v1463 = vadd.f32 %v1334, %v1462
    %1464 = vmatmul.bf16.gmra.mxu0 %v1296
    %v1465 = vpop.f32.mrf.mxu0
    %v1466 = vadd.f32 %v1334, %v1465
    %v1467 = vpop.f32.mrf.mxu0
    %v1468 = vadd.f32 %v1334, %v1467
    %1469 = vmatmul.bf16.gmra.mxu0 %v1298
    %v1470 = vpop.f32.mrf.mxu0
    %v1471 = vadd.f32 %v1334, %v1470
    %v1472 = vpop.f32.mrf.mxu0
    %v1473 = vadd.f32 %v1334, %v1472
    %1474 = vmatmul.bf16.gmra.mxu0 %v1300
    %v1475 = vpop.f32.mrf.mxu0
    %v1476 = vadd.f32 %v1334, %v1475
    %v1477 = vpop.f32.mrf.mxu0
    %v1478 = vadd.f32 %v1334, %v1477
    %1479 = vdwg.mxu0
    %1480 = vmatpush.bf16.msra.mxu0 %v1414
    %1481 = vmatpush.bf16.msra.mxu0 %v1413
    %1482 = vmatpush.bf16.msra.mxu0 %v1412
    %1483 = vmatpush.bf16.msra.mxu0 %v1411
    %1484 = vmatpush.bf16.msra.mxu0 %v1410
    %1485 = vmatpush.bf16.msra.mxu0 %v1409
    %1486 = vmatpush.bf16.msra.mxu0 %v1408
    %1487 = vmatpush.bf16.msra.mxu0 %v1407
    %1488 = vmatmul.bf16.gmra.mxu0 %v1287
    %v1489 = vpop.f32.mrf.mxu0
    %v1490 = vadd.f32 %v1441, %v1489
    %v1491 = vpop.f32.mrf.mxu0
    %v1492 = vadd.f32 %v1443, %v1491
    %1493 = vmatmul.bf16.gmra.mxu0 %v1289
    %v1494 = vpop.f32.mrf.mxu0
    %v1495 = vadd.f32 %v1446, %v1494
    %v1496 = vpop.f32.mrf.mxu0
    %v1497 = vadd.f32 %v1448, %v1496
    %1498 = vmatmul.bf16.gmra.mxu0 %v1291
    %v1499 = vpop.f32.mrf.mxu0
    %v1500 = vadd.f32 %v1451, %v1499
    %v1501 = vpop.f32.mrf.mxu0
    %v1502 = vadd.f32 %v1453, %v1501
    %1503 = vmatmul.bf16.gmra.mxu0 %v1293
    %v1504 = vpop.f32.mrf.mxu0
    %v1505 = vadd.f32 %v1456, %v1504
    %v1506 = vpop.f32.mrf.mxu0
    %v1507 = vadd.f32 %v1458, %v1506
    %1508 = vmatmul.bf16.gmra.mxu0 %v1295
    %v1509 = vpop.f32.mrf.mxu0
    %v1510 = vadd.f32 %v1461, %v1509
    %v1511 = vpop.f32.mrf.mxu0
    %v1512 = vadd.f32 %v1463, %v1511
    %1513 = vmatmul.bf16.gmra.mxu0 %v1297
    %v1514 = vpop.f32.mrf.mxu0
    %v1515 = vadd.f32 %v1466, %v1514
    %v1516 = vpop.f32.mrf.mxu0
    %v1517 = vadd.f32 %v1468, %v1516
    %1518 = vmatmul.bf16.gmra.mxu0 %v1299
    %v1519 = vpop.f32.mrf.mxu0
    %v1520 = vadd.f32 %v1471, %v1519
    %v1521 = vpop.f32.mrf.mxu0
    %v1522 = vadd.f32 %v1473, %v1521
    %1523 = vmatmul.bf16.gmra.mxu0 %v1301
    %v1524 = vpop.f32.mrf.mxu0
    %v1525 = vadd.f32 %v1476, %v1524
    %v1526 = vpop.f32.mrf.mxu0
    %v1527 = vadd.f32 %v1478, %v1526
    %1528 = vdwg.mxu0
    %v1529 = vmax.f32 %v1490, 0.0
    %v1530 = vmax.f32 %v1492, 0.0
    %v1531 = vmax.f32 %v1495, 0.0
    %v1532 = vmax.f32 %v1497, 0.0
    %v1533 = vmax.f32 %v1500, 0.0
    %v1534 = vmax.f32 %v1502, 0.0
    %v1535 = vmax.f32 %v1505, 0.0
    %v1536 = vmax.f32 %v1507, 0.0
    %v1537 = vmax.f32 %v1510, 0.0
    %v1538 = vmax.f32 %v1512, 0.0
    %v1539 = vmax.f32 %v1515, 0.0
    %v1540 = vmax.f32 %v1517, 0.0
    %v1541 = vmax.f32 %v1520, 0.0
    %v1542 = vmax.f32 %v1522, 0.0
    %v1543 = vmax.f32 %v1525, 0.0
    %v1544 = vmax.f32 %v1527, 0.0
    %v1545 = vpack.c.bf16 %v1530, %v1529
    %v1546 = vpack.c.bf16 %v1532, %v1531
    %v1547 = vpack.c.bf16 %v1534, %v1533
    %v1548 = vpack.c.bf16 %v1536, %v1535
    %v1549 = vpack.c.bf16 %v1538, %v1537
    %v1550 = vpack.c.bf16 %v1540, %v1539
    %v1551 = vpack.c.bf16 %v1542, %v1541
    %v1552 = vpack.c.bf16 %v1544, %v1543
    %v1553 = vld [vmem:[#allocation6] sm:$0xf]
    %v1554 = vld [vmem:[#allocation6 + $0x4] sm:$0xf]
    %v1555 = vld [vmem:[#allocation6 + $0x8] sm:$0xf]
    %v1556 = vld [vmem:[#allocation6 + $0xc] sm:$0xf]
    %v1557 = vld [vmem:[#allocation6 + $0x10] sm:$0xf]
    %v1558 = vld [vmem:[#allocation6 + $0x14] sm:$0xf]
    %v1559 = vld [vmem:[#allocation6 + $0x18] sm:$0xf]
    %v1560 = vld [vmem:[#allocation6 + $0x1c] sm:$0xf]
    %v1561 = vld [vmem:[#allocation6 + $0x20] sm:$0xf]
    %v1562 = vld [vmem:[#allocation6 + $0x24] sm:$0xf]
    %v1563 = vld [vmem:[#allocation6 + $0x28] sm:$0xf]
    %v1564 = vld [vmem:[#allocation6 + $0x2c] sm:$0xf]
    %v1565 = vld [vmem:[#allocation6 + $0x30] sm:$0xf]
    %v1566 = vld [vmem:[#allocation6 + $0x34] sm:$0xf]
    %v1567 = vld [vmem:[#allocation6 + $0x38] sm:$0xf]
    %v1568 = vld [vmem:[#allocation6 + $0x3c] sm:$0xf]
    %v1569 = vperm.slane %v71, 3
    %v1586 = vunpack.c.l.b16 %v1553
    %v1587 = vunpack.c.l.b16 %v1554
    %v1588 = vunpack.c.l.b16 %v1555
    %v1589 = vunpack.c.l.b16 %v1556
    %v1590 = vunpack.c.l.b16 %v1557
    %v1591 = vunpack.c.l.b16 %v1558
    %v1592 = vunpack.c.l.b16 %v1559
    %v1593 = vunpack.c.l.b16 %v1560
    %v1594 = vunpack.c.l.b16 %v1561
    %v1595 = vunpack.c.l.b16 %v1562
    %v1596 = vunpack.c.l.b16 %v1563
    %v1597 = vunpack.c.l.b16 %v1564
    %v1598 = vunpack.c.l.b16 %v1565
    %v1599 = vunpack.c.l.b16 %v1566
    %v1600 = vunpack.c.l.b16 %v1567
    %v1601 = vunpack.c.l.b16 %v1568
    %v1602 = vpack.c.b16 %v1587, %v1586
    %v1603 = vpack.c.b16 %v1589, %v1588
    %v1604 = vpack.c.b16 %v1591, %v1590
    %v1605 = vpack.c.b16 %v1593, %v1592
    %v1606 = vpack.c.b16 %v1595, %v1594
    %v1607 = vpack.c.b16 %v1597, %v1596
    %v1608 = vpack.c.b16 %v1599, %v1598
    %v1609 = vpack.c.b16 %v1601, %v1600
    %1618 = vmatpush.bf16.msra.mxu0 %v1609
    %1619 = vmatpush.bf16.msra.mxu0 %v1608
    %1620 = vmatpush.bf16.msra.mxu0 %v1607
    %1621 = vmatpush.bf16.msra.mxu0 %v1606
    %1622 = vmatpush.bf16.msra.mxu0 %v1605
    %1623 = vmatpush.bf16.msra.mxu0 %v1604
    %1624 = vmatpush.bf16.msra.mxu0 %v1603
    %1625 = vmatpush.bf16.msra.mxu0 %v1602
    %1626 = vmatmul.bf16.gmra.mxu0 %v1545
    %v1627 = vpop.f32.mrf.mxu0
    %v1628 = vadd.f32 %v1569, %v1627
    %v1629 = vpop.f32.mrf.mxu0
    %v1630 = vadd.f32 %v1569, %v1629
    %1631 = vmatmul.bf16.gmra.mxu0 %v1546
    %v1632 = vpop.f32.mrf.mxu0
    %v1633 = vadd.f32 %v1569, %v1632
    %v1634 = vpop.f32.mrf.mxu0
    %v1635 = vadd.f32 %v1569, %v1634
    %1636 = vmatmul.bf16.gmra.mxu0 %v1547
    %v1637 = vpop.f32.mrf.mxu0
    %v1638 = vadd.f32 %v1569, %v1637
    %v1639 = vpop.f32.mrf.mxu0
    %v1640 = vadd.f32 %v1569, %v1639
    %1641 = vmatmul.bf16.gmra.mxu0 %v1548
    %v1642 = vpop.f32.mrf.mxu0
    %v1643 = vadd.f32 %v1569, %v1642
    %v1644 = vpop.f32.mrf.mxu0
    %v1645 = vadd.f32 %v1569, %v1644
    %1646 = vmatmul.bf16.gmra.mxu0 %v1549
    %v1647 = vpop.f32.mrf.mxu0
    %v1648 = vadd.f32 %v1569, %v1647
    %v1649 = vpop.f32.mrf.mxu0
    %v1650 = vadd.f32 %v1569, %v1649
    %1651 = vmatmul.bf16.gmra.mxu0 %v1550
    %v1652 = vpop.f32.mrf.mxu0
    %v1653 = vadd.f32 %v1569, %v1652
    %v1654 = vpop.f32.mrf.mxu0
    %v1655 = vadd.f32 %v1569, %v1654
    %1656 = vmatmul.bf16.gmra.mxu0 %v1551
    %v1657 = vpop.f32.mrf.mxu0
    %v1658 = vadd.f32 %v1569, %v1657
    %v1659 = vpop.f32.mrf.mxu0
    %v1660 = vadd.f32 %v1569, %v1659
    %1661 = vmatmul.bf16.gmra.mxu0 %v1552
    %v1662 = vpop.f32.mrf.mxu0
    %v1663 = vadd.f32 %v1569, %v1662
    %v1664 = vpop.f32.mrf.mxu0
    %v1665 = vadd.f32 %v1569, %v1664
    %1666 = vdwg.mxu0
    %v1667 = vmax.f32 %v1628, 0.0
    %v1668 = vmax.f32 %v1630, 0.0
    %v1669 = vmax.f32 %v1633, 0.0
    %v1670 = vmax.f32 %v1635, 0.0
    %v1671 = vmax.f32 %v1638, 0.0
    %v1672 = vmax.f32 %v1640, 0.0
    %v1673 = vmax.f32 %v1643, 0.0
    %v1674 = vmax.f32 %v1645, 0.0
    %v1675 = vmax.f32 %v1648, 0.0
    %v1676 = vmax.f32 %v1650, 0.0
    %v1677 = vmax.f32 %v1653, 0.0
    %v1678 = vmax.f32 %v1655, 0.0
    %v1679 = vmax.f32 %v1658, 0.0
    %v1680 = vmax.f32 %v1660, 0.0
    %v1681 = vmax.f32 %v1663, 0.0
    %v1682 = vmax.f32 %v1665, 0.0
    %v1683 = vpack.c.bf16 %v1668, %v1667
    %v1684 = vpack.c.bf16 %v1670, %v1669
    %v1685 = vpack.c.bf16 %v1672, %v1671
    %v1686 = vpack.c.bf16 %v1674, %v1673
    %v1687 = vpack.c.bf16 %v1676, %v1675
    %v1688 = vpack.c.bf16 %v1678, %v1677
    %v1689 = vpack.c.bf16 %v1680, %v1679
    %v1690 = vpack.c.bf16 %v1682, %v1681
    %v1691 = vld [vmem:[#allocation6 + $0x40] sm:$0xf]
    %v1692 = vld [vmem:[#allocation6 + $0x44] sm:$0xf]
    %v1693 = vld [vmem:[#allocation6 + $0x48] sm:$0xf]
    %v1694 = vld [vmem:[#allocation6 + $0x4c] sm:$0xf]
    %v1695 = vld [vmem:[#allocation6 + $0x50] sm:$0xf]
    %v1696 = vld [vmem:[#allocation6 + $0x54] sm:$0xf]
    %v1697 = vld [vmem:[#allocation6 + $0x58] sm:$0xf]
    %v1698 = vld [vmem:[#allocation6 + $0x5c] sm:$0xf]
    %v1699 = vld [vmem:[#allocation6 + $0x60] sm:$0xf]
    %v1700 = vld [vmem:[#allocation6 + $0x64] sm:$0xf]
    %v1701 = vld [vmem:[#allocation6 + $0x68] sm:$0xf]
    %v1702 = vld [vmem:[#allocation6 + $0x6c] sm:$0xf]
    %v1703 = vld [vmem:[#allocation6 + $0x70] sm:$0xf]
    %v1704 = vld [vmem:[#allocation6 + $0x74] sm:$0xf]
    %v1705 = vld [vmem:[#allocation6 + $0x78] sm:$0xf]
    %v1706 = vld [vmem:[#allocation6 + $0x7c] sm:$0xf]
    %v1707 = vperm.slane %v71, 4
    %v1724 = vunpack.c.l.b16 %v1691
    %v1725 = vunpack.c.l.b16 %v1692
    %v1726 = vunpack.c.l.b16 %v1693
    %v1727 = vunpack.c.l.b16 %v1694
    %v1728 = vunpack.c.l.b16 %v1695
    %v1729 = vunpack.c.l.b16 %v1696
    %v1730 = vunpack.c.l.b16 %v1697
    %v1731 = vunpack.c.l.b16 %v1698
    %v1732 = vunpack.c.l.b16 %v1699
    %v1733 = vunpack.c.l.b16 %v1700
    %v1734 = vunpack.c.l.b16 %v1701
    %v1735 = vunpack.c.l.b16 %v1702
    %v1736 = vunpack.c.l.b16 %v1703
    %v1737 = vunpack.c.l.b16 %v1704
    %v1738 = vunpack.c.l.b16 %v1705
    %v1739 = vunpack.c.l.b16 %v1706
    %v1740 = vpack.c.b16 %v1725, %v1724
    %v1741 = vpack.c.b16 %v1727, %v1726
    %v1742 = vpack.c.b16 %v1729, %v1728
    %v1743 = vpack.c.b16 %v1731, %v1730
    %v1744 = vpack.c.b16 %v1733, %v1732
    %v1745 = vpack.c.b16 %v1735, %v1734
    %v1746 = vpack.c.b16 %v1737, %v1736
    %v1747 = vpack.c.b16 %v1739, %v1738
    %1756 = vmatpush.bf16.msra.mxu0 %v1747
    %1757 = vmatpush.bf16.msra.mxu0 %v1746
    %1758 = vmatpush.bf16.msra.mxu0 %v1745
    %1759 = vmatpush.bf16.msra.mxu0 %v1744
    %1760 = vmatpush.bf16.msra.mxu0 %v1743
    %1761 = vmatpush.bf16.msra.mxu0 %v1742
    %1762 = vmatpush.bf16.msra.mxu0 %v1741
    %1763 = vmatpush.bf16.msra.mxu0 %v1740
    %1764 = vmatmul.bf16.gmra.mxu0 %v1683
    %v1765 = vpop.f32.mrf.mxu0
    %v1766 = vadd.f32 %v1707, %v1765
    %v1767 = vpop.f32.mrf.mxu0
    %v1768 = vadd.f32 %v1707, %v1767
    %1769 = vmatmul.bf16.gmra.mxu0 %v1684
    %v1770 = vpop.f32.mrf.mxu0
    %v1771 = vadd.f32 %v1707, %v1770
    %v1772 = vpop.f32.mrf.mxu0
    %v1773 = vadd.f32 %v1707, %v1772
    %1774 = vmatmul.bf16.gmra.mxu0 %v1685
    %v1775 = vpop.f32.mrf.mxu0
    %v1776 = vadd.f32 %v1707, %v1775
    %v1777 = vpop.f32.mrf.mxu0
    %v1778 = vadd.f32 %v1707, %v1777
    %1779 = vmatmul.bf16.gmra.mxu0 %v1686
    %v1780 = vpop.f32.mrf.mxu0
    %v1781 = vadd.f32 %v1707, %v1780
    %v1782 = vpop.f32.mrf.mxu0
    %v1783 = vadd.f32 %v1707, %v1782
    %1784 = vmatmul.bf16.gmra.mxu0 %v1687
    %v1785 = vpop.f32.mrf.mxu0
    %v1786 = vadd.f32 %v1707, %v1785
    %v1787 = vpop.f32.mrf.mxu0
    %v1788 = vadd.f32 %v1707, %v1787
    %1789 = vmatmul.bf16.gmra.mxu0 %v1688
    %v1790 = vpop.f32.mrf.mxu0
    %v1791 = vadd.f32 %v1707, %v1790
    %v1792 = vpop.f32.mrf.mxu0
    %v1793 = vadd.f32 %v1707, %v1792
    %1794 = vmatmul.bf16.gmra.mxu0 %v1689
    %v1795 = vpop.f32.mrf.mxu0
    %v1796 = vadd.f32 %v1707, %v1795
    %v1797 = vpop.f32.mrf.mxu0
    %v1798 = vadd.f32 %v1707, %v1797
    %1799 = vmatmul.bf16.gmra.mxu0 %v1690
    %v1800 = vpop.f32.mrf.mxu0
    %v1801 = vadd.f32 %v1707, %v1800
    %v1802 = vpop.f32.mrf.mxu0
    %v1803 = vadd.f32 %v1707, %v1802
    %1804 = vdwg.mxu0
    %v1805 = vmax.f32 %v1766, 0.0
    %v1806 = vmax.f32 %v1768, 0.0
    %v1807 = vmax.f32 %v1771, 0.0
    %v1808 = vmax.f32 %v1773, 0.0
    %v1809 = vmax.f32 %v1776, 0.0
    %v1810 = vmax.f32 %v1778, 0.0
    %v1811 = vmax.f32 %v1781, 0.0
    %v1812 = vmax.f32 %v1783, 0.0
    %v1813 = vmax.f32 %v1786, 0.0
    %v1814 = vmax.f32 %v1788, 0.0
    %v1815 = vmax.f32 %v1791, 0.0
    %v1816 = vmax.f32 %v1793, 0.0
    %v1817 = vmax.f32 %v1796, 0.0
    %v1818 = vmax.f32 %v1798, 0.0
    %v1819 = vmax.f32 %v1801, 0.0
    %v1820 = vmax.f32 %v1803, 0.0
    %v1821 = vpack.c.bf16 %v1805, %v1805
    %v1822 = vpack.c.bf16 %v1806, %v1806
    %v1823 = vpack.c.bf16 %v1807, %v1807
    %v1824 = vpack.c.bf16 %v1808, %v1808
    %v1825 = vpack.c.bf16 %v1809, %v1809
    %v1826 = vpack.c.bf16 %v1810, %v1810
    %v1827 = vpack.c.bf16 %v1811, %v1811
    %v1828 = vpack.c.bf16 %v1812, %v1812
    %v1829 = vpack.c.bf16 %v1813, %v1813
    %v1830 = vpack.c.bf16 %v1814, %v1814
    %v1831 = vpack.c.bf16 %v1815, %v1815
    %v1832 = vpack.c.bf16 %v1816, %v1816
    %v1833 = vpack.c.bf16 %v1817, %v1817
    %v1834 = vpack.c.bf16 %v1818, %v1818
    %v1835 = vpack.c.bf16 %v1819, %v1819
    %v1836 = vpack.c.bf16 %v1820, %v1820
    %v1837 = vunpack.c.l.bf16 %v1821
    %v1838 = vunpack.c.l.bf16 %v1822
    %v1839 = vunpack.c.l.bf16 %v1823
    %v1840 = vunpack.c.l.bf16 %v1824
    %v1841 = vunpack.c.l.bf16 %v1825
    %v1842 = vunpack.c.l.bf16 %v1826
    %v1843 = vunpack.c.l.bf16 %v1827
    %v1844 = vunpack.c.l.bf16 %v1828
    %v1845 = vunpack.c.l.bf16 %v1829
    %v1846 = vunpack.c.l.bf16 %v1830
    %v1847 = vunpack.c.l.bf16 %v1831
    %v1848 = vunpack.c.l.bf16 %v1832
    %v1849 = vunpack.c.l.bf16 %v1833
    %v1850 = vunpack.c.l.bf16 %v1834
    %v1851 = vunpack.c.l.bf16 %v1835
    %v1852 = vunpack.c.l.bf16 %v1836
    %v1853 = vperm.slane %v71, 6
    %v1854 = vmul.f32 %v1837, %v1853
    %v1855 = vmul.f32 %v1838, %v1853
    %v1856 = vmul.f32 %v1839, %v1853
    %v1857 = vmul.f32 %v1840, %v1853
    %v1858 = vmul.f32 %v1841, %v1853
    %v1859 = vmul.f32 %v1842, %v1853
    %v1860 = vmul.f32 %v1843, %v1853
    %v1861 = vmul.f32 %v1844, %v1853
    %v1862 = vmul.f32 %v1845, %v1853
    %v1863 = vmul.f32 %v1846, %v1853
    %v1864 = vmul.f32 %v1847, %v1853
    %v1865 = vmul.f32 %v1848, %v1853
    %v1866 = vmul.f32 %v1849, %v1853
    %v1867 = vmul.f32 %v1850, %v1853
    %v1868 = vmul.f32 %v1851, %v1853
    %v1869 = vmul.f32 %v1852, %v1853
    %1870 = vadd.xlane.f32.xlu0 %v1854
    %v1871 = vpop.xlane.xlu0 %1870
    %1872 = vadd.xlane.f32.xlu0 %v1855
    %v1873 = vpop.xlane.xlu0 %1872
    %1874 = vadd.xlane.f32.xlu0 %v1856
    %v1875 = vpop.xlane.xlu0 %1874
    %1876 = vadd.xlane.f32.xlu0 %v1857
    %v1877 = vpop.xlane.xlu0 %1876
    %1878 = vadd.xlane.f32.xlu0 %v1858
    %v1879 = vpop.xlane.xlu0 %1878
    %1880 = vadd.xlane.f32.xlu0 %v1859
    %v1881 = vpop.xlane.xlu0 %1880
    %1882 = vadd.xlane.f32.xlu0 %v1860
    %v1883 = vpop.xlane.xlu0 %1882
    %1884 = vadd.xlane.f32.xlu0 %v1861
    %v1885 = vpop.xlane.xlu0 %1884
    %1886 = vadd.xlane.f32.xlu0 %v1862
    %v1887 = vpop.xlane.xlu0 %1886
    %1888 = vadd.xlane.f32.xlu0 %v1863
    %v1889 = vpop.xlane.xlu0 %1888
    %1890 = vadd.xlane.f32.xlu0 %v1864
    %v1891 = vpop.xlane.xlu0 %1890
    %1892 = vadd.xlane.f32.xlu0 %v1865
    %v1893 = vpop.xlane.xlu0 %1892
    %1894 = vadd.xlane.f32.xlu0 %v1866
    %v1895 = vpop.xlane.xlu0 %1894
    %1896 = vadd.xlane.f32.xlu0 %v1867
    %v1897 = vpop.xlane.xlu0 %1896
    %1898 = vadd.xlane.f32.xlu0 %v1868
    %v1899 = vpop.xlane.xlu0 %1898
    %1900 = vadd.xlane.f32.xlu0 %v1869
    %v1901 = vpop.xlane.xlu0 %1900
    %v1902 = vperm.slane %v71, 5
    %v1903 = vadd.f32 %v1871, %v1902
    %v1904 = vadd.f32 %v1873, %v1902
    %v1905 = vadd.f32 %v1875, %v1902
    %v1906 = vadd.f32 %v1877, %v1902
    %v1907 = vadd.f32 %v1879, %v1902
    %v1908 = vadd.f32 %v1881, %v1902
    %v1909 = vadd.f32 %v1883, %v1902
    %v1910 = vadd.f32 %v1885, %v1902
    %v1911 = vadd.f32 %v1887, %v1902
    %v1912 = vadd.f32 %v1889, %v1902
    %v1913 = vadd.f32 %v1891, %v1902
    %v1914 = vadd.f32 %v1893, %v1902
    %v1915 = vadd.f32 %v1895, %v1902
    %v1916 = vadd.f32 %v1897, %v1902
    %v1917 = vadd.f32 %v1899, %v1902
    %v1918 = vadd.f32 %v1901, %v1902
    %v1919 = vxor.u32 %v1903, 2147483648
    %v1920 = vxor.u32 %v1904, 2147483648
    %v1921 = vxor.u32 %v1905, 2147483648
    %v1922 = vxor.u32 %v1906, 2147483648
    %v1923 = vxor.u32 %v1907, 2147483648
    %v1924 = vxor.u32 %v1908, 2147483648
    %v1925 = vxor.u32 %v1909, 2147483648
    %v1926 = vxor.u32 %v1910, 2147483648
    %v1927 = vxor.u32 %v1911, 2147483648
    %v1928 = vxor.u32 %v1912, 2147483648
    %v1929 = vxor.u32 %v1913, 2147483648
    %v1930 = vxor.u32 %v1914, 2147483648
    %v1931 = vxor.u32 %v1915, 2147483648
    %v1932 = vxor.u32 %v1916, 2147483648
    %v1933 = vxor.u32 %v1917, 2147483648
    %v1934 = vxor.u32 %v1918, 2147483648
    %v1935 = vmul.f32 %v1919, 1.442695
    %v1936 = vpow.pop %v1935
    %v1937 = vmul.f32 %v1920, 1.442695
    %v1938 = vpow.pop %v1937
    %v1939 = vmul.f32 %v1921, 1.442695
    %v1940 = vpow.pop %v1939
    %v1941 = vmul.f32 %v1922, 1.442695
    %v1942 = vpow.pop %v1941
    %v1943 = vmul.f32 %v1923, 1.442695
    %v1944 = vpow.pop %v1943
    %v1945 = vmul.f32 %v1924, 1.442695
    %v1946 = vpow.pop %v1945
    %v1947 = vmul.f32 %v1925, 1.442695
    %v1948 = vpow.pop %v1947
    %v1949 = vmul.f32 %v1926, 1.442695
    %v1950 = vpow.pop %v1949
    %v1951 = vmul.f32 %v1927, 1.442695
    %v1952 = vpow.pop %v1951
    %v1953 = vmul.f32 %v1928, 1.442695
    %v1954 = vpow.pop %v1953
    %v1955 = vmul.f32 %v1929, 1.442695
    %v1956 = vpow.pop %v1955
    %v1957 = vmul.f32 %v1930, 1.442695
    %v1958 = vpow.pop %v1957
    %v1959 = vmul.f32 %v1931, 1.442695
    %v1960 = vpow.pop %v1959
    %v1961 = vmul.f32 %v1932, 1.442695
    %v1962 = vpow.pop %v1961
    %v1963 = vmul.f32 %v1933, 1.442695
    %v1964 = vpow.pop %v1963
    %v1965 = vmul.f32 %v1934, 1.442695
    %v1966 = vpow.pop %v1965
    %v1967 = vadd.f32 %v1936, 1.0
    %v1968 = vadd.f32 %v1938, 1.0
    %v1969 = vadd.f32 %v1940, 1.0
    %v1970 = vadd.f32 %v1942, 1.0
    %v1971 = vadd.f32 %v1944, 1.0
    %v1972 = vadd.f32 %v1946, 1.0
    %v1973 = vadd.f32 %v1948, 1.0
    %v1974 = vadd.f32 %v1950, 1.0
    %v1975 = vadd.f32 %v1952, 1.0
    %v1976 = vadd.f32 %v1954, 1.0
    %v1977 = vadd.f32 %v1956, 1.0
    %v1978 = vadd.f32 %v1958, 1.0
    %v1979 = vadd.f32 %v1960, 1.0
    %v1980 = vadd.f32 %v1962, 1.0
    %v1981 = vadd.f32 %v1964, 1.0
    %v1982 = vadd.f32 %v1966, 1.0
    %v1983 = vrcp.pop %v1967
    %v1984 = vmul.f32 %v1967, %v1983
    %v1985 = vsub.f32 1.0, %v1984
    %v1986 = vmul.f32 %v1983, %v1985
    %v1987 = vadd.f32 %v1983, %v1986
    %vm1988 = vweird.f32 %v1967
    %vm1989 = vweird.f32 %v1983
    %vm1990 = vmor %vm1988, %vm1989
    %v1991 = vsel %vm1990, %v1983, %v1987
    %v1992 = vand.u32 2147483647, %v1967
    %vm1993 = vcmp.eq.f32.partialorder %v1992, 8.507059e+37
    %v1994 = vand.u32 %v1967, 2147483648
    %v1995 = vor.u32 1.1754944e-38, %v1994
    %v1996 = vsel %vm1993, %v1995, %v1991
    %v1997 = vmul.f32 1.0, %v1996
    %v1998 = vrcp.pop %v1968
    %v1999 = vmul.f32 %v1968, %v1998
    %v2000 = vsub.f32 1.0, %v1999
    %v2001 = vmul.f32 %v1998, %v2000
    %v2002 = vadd.f32 %v1998, %v2001
    %vm2003 = vweird.f32 %v1968
    %vm2004 = vweird.f32 %v1998
    %vm2005 = vmor %vm2003, %vm2004
    %v2006 = vsel %vm2005, %v1998, %v2002
    %v2007 = vand.u32 2147483647, %v1968
    %vm2008 = vcmp.eq.f32.partialorder %v2007, 8.507059e+37
    %v2009 = vand.u32 %v1968, 2147483648
    %v2010 = vor.u32 1.1754944e-38, %v2009
    %v2011 = vsel %vm2008, %v2010, %v2006
    %v2012 = vmul.f32 1.0, %v2011
    %v2013 = vrcp.pop %v1969
    %v2014 = vmul.f32 %v1969, %v2013
    %v2015 = vsub.f32 1.0, %v2014
    %v2016 = vmul.f32 %v2013, %v2015
    %v2017 = vadd.f32 %v2013, %v2016
    %vm2018 = vweird.f32 %v1969
    %vm2019 = vweird.f32 %v2013
    %vm2020 = vmor %vm2018, %vm2019
    %v2021 = vsel %vm2020, %v2013, %v2017
    %v2022 = vand.u32 2147483647, %v1969
    %vm2023 = vcmp.eq.f32.partialorder %v2022, 8.507059e+37
    %v2024 = vand.u32 %v1969, 2147483648
    %v2025 = vor.u32 1.1754944e-38, %v2024
    %v2026 = vsel %vm2023, %v2025, %v2021
    %v2027 = vmul.f32 1.0, %v2026
    %v2028 = vrcp.pop %v1970
    %v2029 = vmul.f32 %v1970, %v2028
    %v2030 = vsub.f32 1.0, %v2029
    %v2031 = vmul.f32 %v2028, %v2030
    %v2032 = vadd.f32 %v2028, %v2031
    %vm2033 = vweird.f32 %v1970
    %vm2034 = vweird.f32 %v2028
    %vm2035 = vmor %vm2033, %vm2034
    %v2036 = vsel %vm2035, %v2028, %v2032
    %v2037 = vand.u32 2147483647, %v1970
    %vm2038 = vcmp.eq.f32.partialorder %v2037, 8.507059e+37
    %v2039 = vand.u32 %v1970, 2147483648
    %v2040 = vor.u32 1.1754944e-38, %v2039
    %v2041 = vsel %vm2038, %v2040, %v2036
    %v2042 = vmul.f32 1.0, %v2041
    %v2043 = vrcp.pop %v1971
    %v2044 = vmul.f32 %v1971, %v2043
    %v2045 = vsub.f32 1.0, %v2044
    %v2046 = vmul.f32 %v2043, %v2045
    %v2047 = vadd.f32 %v2043, %v2046
    %vm2048 = vweird.f32 %v1971
    %vm2049 = vweird.f32 %v2043
    %vm2050 = vmor %vm2048, %vm2049
    %v2051 = vsel %vm2050, %v2043, %v2047
    %v2052 = vand.u32 2147483647, %v1971
    %vm2053 = vcmp.eq.f32.partialorder %v2052, 8.507059e+37
    %v2054 = vand.u32 %v1971, 2147483648
    %v2055 = vor.u32 1.1754944e-38, %v2054
    %v2056 = vsel %vm2053, %v2055, %v2051
    %v2057 = vmul.f32 1.0, %v2056
    %v2058 = vrcp.pop %v1972
    %v2059 = vmul.f32 %v1972, %v2058
    %v2060 = vsub.f32 1.0, %v2059
    %v2061 = vmul.f32 %v2058, %v2060
    %v2062 = vadd.f32 %v2058, %v2061
    %vm2063 = vweird.f32 %v1972
    %vm2064 = vweird.f32 %v2058
    %vm2065 = vmor %vm2063, %vm2064
    %v2066 = vsel %vm2065, %v2058, %v2062
    %v2067 = vand.u32 2147483647, %v1972
    %vm2068 = vcmp.eq.f32.partialorder %v2067, 8.507059e+37
    %v2069 = vand.u32 %v1972, 2147483648
    %v2070 = vor.u32 1.1754944e-38, %v2069
    %v2071 = vsel %vm2068, %v2070, %v2066
    %v2072 = vmul.f32 1.0, %v2071
    %v2073 = vrcp.pop %v1973
    %v2074 = vmul.f32 %v1973, %v2073
    %v2075 = vsub.f32 1.0, %v2074
    %v2076 = vmul.f32 %v2073, %v2075
    %v2077 = vadd.f32 %v2073, %v2076
    %vm2078 = vweird.f32 %v1973
    %vm2079 = vweird.f32 %v2073
    %vm2080 = vmor %vm2078, %vm2079
    %v2081 = vsel %vm2080, %v2073, %v2077
    %v2082 = vand.u32 2147483647, %v1973
    %vm2083 = vcmp.eq.f32.partialorder %v2082, 8.507059e+37
    %v2084 = vand.u32 %v1973, 2147483648
    %v2085 = vor.u32 1.1754944e-38, %v2084
    %v2086 = vsel %vm2083, %v2085, %v2081
    %v2087 = vmul.f32 1.0, %v2086
    %v2088 = vrcp.pop %v1974
    %v2089 = vmul.f32 %v1974, %v2088
    %v2090 = vsub.f32 1.0, %v2089
    %v2091 = vmul.f32 %v2088, %v2090
    %v2092 = vadd.f32 %v2088, %v2091
    %vm2093 = vweird.f32 %v1974
    %vm2094 = vweird.f32 %v2088
    %vm2095 = vmor %vm2093, %vm2094
    %v2096 = vsel %vm2095, %v2088, %v2092
    %v2097 = vand.u32 2147483647, %v1974
    %vm2098 = vcmp.eq.f32.partialorder %v2097, 8.507059e+37
    %v2099 = vand.u32 %v1974, 2147483648
    %v2100 = vor.u32 1.1754944e-38, %v2099
    %v2101 = vsel %vm2098, %v2100, %v2096
    %v2102 = vmul.f32 1.0, %v2101
    %v2103 = vrcp.pop %v1975
    %v2104 = vmul.f32 %v1975, %v2103
    %v2105 = vsub.f32 1.0, %v2104
    %v2106 = vmul.f32 %v2103, %v2105
    %v2107 = vadd.f32 %v2103, %v2106
    %vm2108 = vweird.f32 %v1975
    %vm2109 = vweird.f32 %v2103
    %vm2110 = vmor %vm2108, %vm2109
    %v2111 = vsel %vm2110, %v2103, %v2107
    %v2112 = vand.u32 2147483647, %v1975
    %vm2113 = vcmp.eq.f32.partialorder %v2112, 8.507059e+37
    %v2114 = vand.u32 %v1975, 2147483648
    %v2115 = vor.u32 1.1754944e-38, %v2114
    %v2116 = vsel %vm2113, %v2115, %v2111
    %v2117 = vmul.f32 1.0, %v2116
    %v2118 = vrcp.pop %v1976
    %v2119 = vmul.f32 %v1976, %v2118
    %v2120 = vsub.f32 1.0, %v2119
    %v2121 = vmul.f32 %v2118, %v2120
    %v2122 = vadd.f32 %v2118, %v2121
    %vm2123 = vweird.f32 %v1976
    %vm2124 = vweird.f32 %v2118
    %vm2125 = vmor %vm2123, %vm2124
    %v2126 = vsel %vm2125, %v2118, %v2122
    %v2127 = vand.u32 2147483647, %v1976
    %vm2128 = vcmp.eq.f32.partialorder %v2127, 8.507059e+37
    %v2129 = vand.u32 %v1976, 2147483648
    %v2130 = vor.u32 1.1754944e-38, %v2129
    %v2131 = vsel %vm2128, %v2130, %v2126
    %v2132 = vmul.f32 1.0, %v2131
    %v2133 = vrcp.pop %v1977
    %v2134 = vmul.f32 %v1977, %v2133
    %v2135 = vsub.f32 1.0, %v2134
    %v2136 = vmul.f32 %v2133, %v2135
    %v2137 = vadd.f32 %v2133, %v2136
    %vm2138 = vweird.f32 %v1977
    %vm2139 = vweird.f32 %v2133
    %vm2140 = vmor %vm2138, %vm2139
    %v2141 = vsel %vm2140, %v2133, %v2137
    %v2142 = vand.u32 2147483647, %v1977
    %vm2143 = vcmp.eq.f32.partialorder %v2142, 8.507059e+37
    %v2144 = vand.u32 %v1977, 2147483648
    %v2145 = vor.u32 1.1754944e-38, %v2144
    %v2146 = vsel %vm2143, %v2145, %v2141
    %v2147 = vmul.f32 1.0, %v2146
    %v2148 = vrcp.pop %v1978
    %v2149 = vmul.f32 %v1978, %v2148
    %v2150 = vsub.f32 1.0, %v2149
    %v2151 = vmul.f32 %v2148, %v2150
    %v2152 = vadd.f32 %v2148, %v2151
    %vm2153 = vweird.f32 %v1978
    %vm2154 = vweird.f32 %v2148
    %vm2155 = vmor %vm2153, %vm2154
    %v2156 = vsel %vm2155, %v2148, %v2152
    %v2157 = vand.u32 2147483647, %v1978
    %vm2158 = vcmp.eq.f32.partialorder %v2157, 8.507059e+37
    %v2159 = vand.u32 %v1978, 2147483648
    %v2160 = vor.u32 1.1754944e-38, %v2159
    %v2161 = vsel %vm2158, %v2160, %v2156
    %v2162 = vmul.f32 1.0, %v2161
    %v2163 = vrcp.pop %v1979
    %v2164 = vmul.f32 %v1979, %v2163
    %v2165 = vsub.f32 1.0, %v2164
    %v2166 = vmul.f32 %v2163, %v2165
    %v2167 = vadd.f32 %v2163, %v2166
    %vm2168 = vweird.f32 %v1979
    %vm2169 = vweird.f32 %v2163
    %vm2170 = vmor %vm2168, %vm2169
    %v2171 = vsel %vm2170, %v2163, %v2167
    %v2172 = vand.u32 2147483647, %v1979
    %vm2173 = vcmp.eq.f32.partialorder %v2172, 8.507059e+37
    %v2174 = vand.u32 %v1979, 2147483648
    %v2175 = vor.u32 1.1754944e-38, %v2174
    %v2176 = vsel %vm2173, %v2175, %v2171
    %v2177 = vmul.f32 1.0, %v2176
    %v2178 = vrcp.pop %v1980
    %v2179 = vmul.f32 %v1980, %v2178
    %v2180 = vsub.f32 1.0, %v2179
    %v2181 = vmul.f32 %v2178, %v2180
    %v2182 = vadd.f32 %v2178, %v2181
    %vm2183 = vweird.f32 %v1980
    %vm2184 = vweird.f32 %v2178
    %vm2185 = vmor %vm2183, %vm2184
    %v2186 = vsel %vm2185, %v2178, %v2182
    %v2187 = vand.u32 2147483647, %v1980
    %vm2188 = vcmp.eq.f32.partialorder %v2187, 8.507059e+37
    %v2189 = vand.u32 %v1980, 2147483648
    %v2190 = vor.u32 1.1754944e-38, %v2189
    %v2191 = vsel %vm2188, %v2190, %v2186
    %v2192 = vmul.f32 1.0, %v2191
    %v2193 = vrcp.pop %v1981
    %v2194 = vmul.f32 %v1981, %v2193
    %v2195 = vsub.f32 1.0, %v2194
    %v2196 = vmul.f32 %v2193, %v2195
    %v2197 = vadd.f32 %v2193, %v2196
    %vm2198 = vweird.f32 %v1981
    %vm2199 = vweird.f32 %v2193
    %vm2200 = vmor %vm2198, %vm2199
    %v2201 = vsel %vm2200, %v2193, %v2197
    %v2202 = vand.u32 2147483647, %v1981
    %vm2203 = vcmp.eq.f32.partialorder %v2202, 8.507059e+37
    %v2204 = vand.u32 %v1981, 2147483648
    %v2205 = vor.u32 1.1754944e-38, %v2204
    %v2206 = vsel %vm2203, %v2205, %v2201
    %v2207 = vmul.f32 1.0, %v2206
    %v2208 = vrcp.pop %v1982
    %v2209 = vmul.f32 %v1982, %v2208
    %v2210 = vsub.f32 1.0, %v2209
    %v2211 = vmul.f32 %v2208, %v2210
    %v2212 = vadd.f32 %v2208, %v2211
    %vm2213 = vweird.f32 %v1982
    %vm2214 = vweird.f32 %v2208
    %vm2215 = vmor %vm2213, %vm2214
    %v2216 = vsel %vm2215, %v2208, %v2212
    %v2217 = vand.u32 2147483647, %v1982
    %vm2218 = vcmp.eq.f32.partialorder %v2217, 8.507059e+37
    %v2219 = vand.u32 %v1982, 2147483648
    %v2220 = vor.u32 1.1754944e-38, %v2219
    %v2221 = vsel %vm2218, %v2220, %v2216
    %v2222 = vmul.f32 1.0, %v2221
    %vm2223 = vcmask 7168
    %2224 = vst.msk [vmem:[%s6] sm:$0xff] %vm2223, %v1997
    %2225 = vst.msk [vmem:[%s6 + $0x8] sm:$0xff] %vm2223, %v2012
    %2226 = vst.msk [vmem:[%s6 + $0x10] sm:$0xff] %vm2223, %v2027
    %2227 = vst.msk [vmem:[%s6 + $0x18] sm:$0xff] %vm2223, %v2042
    %2228 = vst.msk [vmem:[%s6 + $0x20] sm:$0xff] %vm2223, %v2057
    %2229 = vst.msk [vmem:[%s6 + $0x28] sm:$0xff] %vm2223, %v2072
    %2230 = vst.msk [vmem:[%s6 + $0x30] sm:$0xff] %vm2223, %v2087
    %2231 = vst.msk [vmem:[%s6 + $0x38] sm:$0xff] %vm2223, %v2102
    %2232 = vst.msk [vmem:[%s6 + $0x40] sm:$0xff] %vm2223, %v2117
    %2233 = vst.msk [vmem:[%s6 + $0x48] sm:$0xff] %vm2223, %v2132
    %2234 = vst.msk [vmem:[%s6 + $0x50] sm:$0xff] %vm2223, %v2147
    %2235 = vst.msk [vmem:[%s6 + $0x58] sm:$0xff] %vm2223, %v2162
    %2236 = vst.msk [vmem:[%s6 + $0x60] sm:$0xff] %vm2223, %v2177
    %2237 = vst.msk [vmem:[%s6 + $0x68] sm:$0xff] %vm2223, %v2192
    %2238 = vst.msk [vmem:[%s6 + $0x70] sm:$0xff] %vm2223, %v2207
    %2239 = vst.msk [vmem:[%s6 + $0x78] sm:$0xff] %vm2223, %v2222
    // Predicated region
    $region38: #{salary_predictor_forward.1} parent=1 // pred_check
      _
    $region39: #{salary_predictor_forward.1} parent=1 // pred_check_branch
      %2241 = sbr.rel (0) target = $region41
    $region40: #{salary_predictor_forward.1} parent=1 // pred_region
      _
    $region41: #{salary_predictor_forward.1} parent=1 // pred_fallthru
      _
    // Predicated region
    $region42: #{salary_predictor_forward.1} parent=1 // pred_check
      _
    $region43: #{salary_predictor_forward.1} parent=1 // pred_check_branch
      %2243 = sbr.rel (0) target = $region45
    $region44: #{salary_predictor_forward.1} parent=1 // pred_region
      _
    $region45: #{salary_predictor_forward.1} parent=1 // pred_fallthru
      _
    %2244 = vsyncpa [#allocation3], 1
    %2245 = vsyncpa [#allocation5], 1

</llo_original>
